<compile_context>
chip_gen: v5e
topology: v5e:2x2
jax: 0.10.0
libtpu: 0.0.40
codegen_flags: <defaults>
</compile_context>

<pallas_src>
import jax
import jax.numpy as jnp
from jax.experimental import pallas as pl
from jax.experimental.pallas import tpu as pltpu

F_IN = 128   # in_channels
C = 512      # out_channels per head
H = 8        # heads
F_OUT = 512  # final linear output
HC = H * C   # 4096
G = 2        # head groups (parallel grid axis)
HPG = H // G # heads per group


def gat_head_kernel(x_ref, w_ref, adst_ref, asrc_ref, adj_ref, wlin_ref, out_ref):
    hh = pl.program_id(1)

    @pl.when(hh == 0)
    def _():
        out_ref[...] = jnp.zeros_like(out_ref)

    # --- per-head feature transform: bf16 x bf16 -> f32 accumulate (MXU) ---
    xh = jnp.dot(x_ref[...], w_ref[...],
                 preferred_element_type=jnp.float32)            # [N, C]

    # --- attention logits (f32): row = destination i, col = source j ---
    logits = adst_ref[0] + asrc_ref[0]                          # [N,1]+[1,N] -> [N,N]
    e = jnp.maximum(logits, 0.2 * logits)                       # LeakyReLU(0.2)

    adj = adj_ref[...]                                          # [N, N]
    m = jnp.max(jnp.where(adj > 0, e, -1e30), axis=-1, keepdims=True)
    p = adj * jnp.exp(e - m)                                    # zero non-edges
    attn = p / jnp.sum(p, axis=-1, keepdims=True)               # [N, N]

    # --- aggregate messages and project through this head's linear slice ---
    gat_h = jnp.dot(attn, xh, preferred_element_type=jnp.float32)  # [N, C]
    out_ref[...] += jnp.dot(gat_h.astype(jnp.bfloat16), wlin_ref[...],
                            preferred_element_type=jnp.float32)    # [N, F_OUT]


def build_adj(edge_index, num_nodes):
    """Dense adjacency mask adj[dst, src] with self-loops (PyG default)."""
    adj = jnp.zeros((num_nodes, num_nodes), jnp.float32)
    adj = adj.at[edge_index[1], edge_index[0]].set(1.0)
    return jnp.maximum(adj, jnp.eye(num_nodes, dtype=jnp.float32))


def gat_layer(x, edge_index, W, att_src, att_dst, bgat, wlin, blin):
    N = x.shape[0]
    adj = build_adj(edge_index, N)

    # Fold attention vectors into the weight: <x@W_h, a_h> = x @ (W_h @ a_h).
    # Kept in f32 (attention/softmax path stays f32).
    W3 = W.reshape(F_IN, H, C)
    a_dst = x @ jnp.einsum('fhc,hc->fh', W3, att_dst)            # [N, H]
    a_src = x @ jnp.einsum('fhc,hc->fh', W3, att_src)            # [N, H]
    alpha_dst = a_dst.T.reshape(H, N, 1)                         # per-head [N, 1]
    alpha_src = a_src.T.reshape(H, 1, N)                         # per-head [1, N]

    # bf16 copies of the large operands (half the HBM traffic, native MXU rate).
    x_bf = x.astype(jnp.bfloat16)
    w_bf = W.astype(jnp.bfloat16)
    wlin_bf = wlin.astype(jnp.bfloat16)

    partials = pl.pallas_call(
        gat_head_kernel,
        out_shape=jax.ShapeDtypeStruct((G * N, F_OUT), jnp.float32),
        grid=(G, HPG),
        in_specs=[
            pl.BlockSpec((N, F_IN), lambda g, h: (0, 0)),               # x (bf16)
            pl.BlockSpec((F_IN, C), lambda g, h: (0, g * HPG + h)),     # W head slice
            pl.BlockSpec((1, N, 1), lambda g, h: (g * HPG + h, 0, 0)),  # alpha_dst
            pl.BlockSpec((1, 1, N), lambda g, h: (g * HPG + h, 0, 0)),  # alpha_src
            pl.BlockSpec((N, N), lambda g, h: (0, 0)),                  # adjacency
            pl.BlockSpec((C, F_OUT), lambda g, h: (g * HPG + h, 0)),    # wlin head slice
        ],
        out_specs=pl.BlockSpec((N, F_OUT), lambda g, h: (g, 0)),        # per-group accumulator
        compiler_params=pltpu.CompilerParams(
            dimension_semantics=("parallel", "arbitrary"),
            vmem_limit_bytes=32 * 1024 * 1024),
    )(x_bf, w_bf, alpha_dst, alpha_src, adj, wlin_bf)

    # Sum head-group partials; GAT bias folded into the linear bias (exact).
    out = partials.reshape(G, N, F_OUT).sum(axis=0)
    return out + (bgat @ wlin + blin)


def ref_forward(x, adj, W, att_src, att_dst, bgat, wlin, blin):
    """Plain-JAX reference of the same inference-mode GATConv + Linear, using
    the same precision policy as the kernel (bf16 big matmuls, f32 attention)."""
    N = x.shape[0]
    W3 = W.reshape(F_IN, H, C)
    a_dst = x @ jnp.einsum('fhc,hc->fh', W3, att_dst)            # [N, H] f32
    a_src = x @ jnp.einsum('fhc,hc->fh', W3, att_src)            # [N, H] f32
    xw = jnp.dot(x.astype(jnp.bfloat16), W.astype(jnp.bfloat16),
                 preferred_element_type=jnp.float32)
    xh = xw.reshape(N, H, C)
    logits = a_dst[:, None, :] + a_src[None, :, :]               # [dst, src, H]
    e = jnp.maximum(logits, 0.2 * logits)
    m = jnp.max(jnp.where(adj[:, :, None] > 0, e, -1e30), axis=1, keepdims=True)
    p = adj[:, :, None] * jnp.exp(e - m)
    attn = p / jnp.sum(p, axis=1, keepdims=True)
    gat = jnp.einsum('ijh,jhc->ihc', attn, xh).reshape(N, HC)
    out = jnp.dot(gat.astype(jnp.bfloat16), wlin.astype(jnp.bfloat16),
                  preferred_element_type=jnp.float32)
    return out + (bgat @ wlin + blin)


if __name__ == "__main__":
    N = 16  # number of graph nodes

    key = jax.random.PRNGKey(0)
    k_x, k_w, k_as, k_ad, k_bg, k_wl, k_bl = jax.random.split(key, 7)

    # parameters (shapes from GATConv(128, 512, heads=8) + Linear(4096, 512))
    x = jax.random.normal(k_x, (N, F_IN), dtype=jnp.float32)
    W = jax.random.normal(k_w, (F_IN, HC), dtype=jnp.float32) * 0.05
    att_src = jax.random.normal(k_as, (H, C), dtype=jnp.float32) * 0.05
    att_dst = jax.random.normal(k_ad, (H, C), dtype=jnp.float32) * 0.05
    bgat = jax.random.normal(k_bg, (1, HC), dtype=jnp.float32) * 0.01
    wlin = jax.random.normal(k_wl, (HC, F_OUT), dtype=jnp.float32) * 0.02
    blin = jax.random.normal(k_bl, (1, F_OUT), dtype=jnp.float32) * 0.01

    # deterministic edge_index [2, E]: bidirectional ring over N nodes
    src = jnp.arange(N, dtype=jnp.int32)
    dst = (src + 1) % N
    edge_index = jnp.stack([jnp.concatenate([src, dst]),
                            jnp.concatenate([dst, src])])        # [2, 32]

    out = gat_layer(x, edge_index, W, att_src, att_dst, bgat, wlin, blin)
    out = jax.block_until_ready(out)

    adj = build_adj(edge_index, N)
    ref = ref_forward(x, adj, W, att_src, att_dst, bgat, wlin, blin)
    assert out.shape == (N, F_OUT)
    assert jnp.allclose(out, ref, rtol=2e-3, atol=2e-3), "mismatch vs reference"

    print("KERNEL_OK")
</pallas_src>

<mosaic_0001>
module attributes {stable_mosaic.version = 11 : i64} {
  func.func @gat_head_kernel(%arg0: i32, %arg1: i32, %arg2: memref<16x128xbf16, #tpu.memory_space<vmem>>, %arg3: memref<128x512xbf16, #tpu.memory_space<vmem>>, %arg4: memref<1x16x1xf32, #tpu.memory_space<vmem>>, %arg5: memref<1x1x16xf32, #tpu.memory_space<vmem>>, %arg6: memref<16x16xf32, #tpu.memory_space<vmem>>, %arg7: memref<512x512xbf16, #tpu.memory_space<vmem>>, %arg8: memref<16x512xf32, #tpu.memory_space<vmem>>) attributes {dimension_semantics = [#tpu.dimension_semantics<parallel>, #tpu.dimension_semantics<arbitrary>], iteration_bounds = array<i64: 2, 4>, scalar_prefetch = 0 : i64, scratch_operands = 0 : i64, tpu.core_type = #tpu.core_type<tc>, window_params = [{pipeline_mode = #tpu.pipeline_mode<synchronous>, transform_indices = @transform_0, window_bounds = array<i64: 16, 128>}, {transform_indices = @transform_1, window_bounds = array<i64: 128, 512>}, {transform_indices = @transform_2, window_bounds = array<i64: 1, 16, 1>}, {transform_indices = @transform_3, window_bounds = array<i64: 1, 1, 16>}, {pipeline_mode = #tpu.pipeline_mode<synchronous>, transform_indices = @transform_4, window_bounds = array<i64: 16, 16>}, {transform_indices = @transform_5, window_bounds = array<i64: 512, 512>}, {transform_indices = @transform_6, window_bounds = array<i64: 16, 512>}]} {
    %c0_i32 = arith.constant 0 : i32
    %0 = arith.cmpi eq, %arg1, %c0_i32 : i32
    %1 = arith.extui %0 : i1 to i32
    %c0_i32_0 = arith.constant 0 : i32
    %2 = arith.cmpi ne, %1, %c0_i32_0 : i32
    scf.if %2 {
      %cst_25 = arith.constant 0.000000e+00 : f32
      %38 = vector.broadcast %cst_25 : f32 to vector<16x512xf32>
      %c0_26 = arith.constant 0 : index
      %c0_27 = arith.constant 0 : index
      %39 = vector.load %arg8[%c0_26, %c0_27] : memref<16x512xf32, #tpu.memory_space<vmem>>, vector<16x512xf32>
      tpu.vector_store %arg8[%c0_26, %c0_27], %38 {strides = array<i32>} : memref<16x512xf32, #tpu.memory_space<vmem>>, vector<16x512xf32>,
    } else {
    }
    %c0 = arith.constant 0 : index
    %c0_1 = arith.constant 0 : index
    %3 = vector.load %arg2[%c0, %c0_1] : memref<16x128xbf16, #tpu.memory_space<vmem>>, vector<16x128xbf16>
    %c0_2 = arith.constant 0 : index
    %c0_3 = arith.constant 0 : index
    %4 = vector.load %arg3[%c0_2, %c0_3] : memref<128x512xbf16, #tpu.memory_space<vmem>>, vector<128x512xbf16>
    %cst = arith.constant dense<0.000000e+00> : vector<16x512xf32>
    %5 = tpu.matmul %3, %4, %cst {dimension_numbers = #tpu.dot_dimension_numbers<[1], [0], [0], [1], [0, 0, 1, 1], [], []>} : vector<16x128xbf16>, vector<128x512xbf16>, vector<16x512xf32> -> vector<16x512xf32>
    %c0_4 = arith.constant 0 : index
    %c0_5 = arith.constant 0 : index
    %c0_6 = arith.constant 0 : index
    %6 = vector.load %arg4[%c0_4, %c0_5, %c0_6] : memref<1x16x1xf32, #tpu.memory_space<vmem>>, vector<1x16x1xf32>
    %7 = vector.shape_cast %6 : vector<1x16x1xf32> to vector<16x1xf32>
    %c0_7 = arith.constant 0 : index
    %c0_8 = arith.constant 0 : index
    %c0_9 = arith.constant 0 : index
    %8 = vector.load %arg5[%c0_7, %c0_8, %c0_9] : memref<1x1x16xf32, #tpu.memory_space<vmem>>, vector<1x1x16xf32>
    %9 = vector.shape_cast %8 : vector<1x1x16xf32> to vector<1x16xf32>
    %10 = vector.broadcast %7 : vector<16x1xf32> to vector<16x16xf32>
    %11 = vector.broadcast %9 : vector<1x16xf32> to vector<16x16xf32>
    %12 = arith.addf %10, %11 : vector<16x16xf32>
    %cst_10 = arith.constant 2.000000e-01 : f32
    %13 = vector.broadcast %cst_10 : f32 to vector<16x16xf32>
    %14 = arith.mulf %13, %12 : vector<16x16xf32>
    %15 = arith.maximumf %12, %14 : vector<16x16xf32>
    %c0_11 = arith.constant 0 : index
    %c0_12 = arith.constant 0 : index
    %16 = vector.load %arg6[%c0_11, %c0_12] : memref<16x16xf32, #tpu.memory_space<vmem>>, vector<16x16xf32>
    %cst_13 = arith.constant 0.000000e+00 : f32
    %17 = vector.broadcast %cst_13 : f32 to vector<16x16xf32>
    %18 = arith.cmpf ogt, %16, %17 : vector<16x16xf32>
    %cst_14 = arith.constant -1.000000e+30 : f32
    %19 = vector.broadcast %cst_14 : f32 to vector<16x16xf32>
    %20 = arith.select %18, %15, %19 : vector<16x16xi1>, vector<16x16xf32>
    %cst_15 = arith.constant dense<0xFF800000> : vector<16xf32>
    %21 = vector.multi_reduction <maximumf>, %20, %cst_15 [1] : vector<16x16xf32> to vector<16xf32>
    %22 = vector.shape_cast %21 : vector<16xf32> to vector<16x1xf32>
    %23 = vector.broadcast %22 : vector<16x1xf32> to vector<16x16xf32>
    %24 = arith.subf %15, %23 : vector<16x16xf32>
    %25 = math.exp %24 : vector<16x16xf32>
    %26 = arith.mulf %16, %25 : vector<16x16xf32>
    %cst_16 = arith.constant dense<0.000000e+00> : vector<16xf32>
    %27 = vector.multi_reduction <add>, %26, %cst_16 [1] : vector<16x16xf32> to vector<16xf32>
    %28 = vector.shape_cast %27 : vector<16xf32> to vector<16x1xf32>
    %29 = vector.broadcast %28 : vector<16x1xf32> to vector<16x16xf32>
    %30 = arith.divf %26, %29 : vector<16x16xf32>
    %cst_17 = arith.constant dense<0.000000e+00> : vector<16x512xf32>
    %31 = tpu.matmul %30, %5, %cst_17 {dimension_numbers = #tpu.dot_dimension_numbers<[1], [0], [0], [1], [0, 0, 1, 1], [], []>} : vector<16x16xf32>, vector<16x512xf32>, vector<16x512xf32> -> vector<16x512xf32>
    %c0_18 = arith.constant 0 : index
    %c0_19 = arith.constant 0 : index
    %32 = vector.load %arg8[%c0_18, %c0_19] : memref<16x512xf32, #tpu.memory_space<vmem>>, vector<16x512xf32>
    %33 = arith.truncf %31 : vector<16x512xf32> to vector<16x512xbf16>
    %c0_20 = arith.constant 0 : index
    %c0_21 = arith.constant 0 : index
    %34 = vector.load %arg7[%c0_20, %c0_21] : memref<512x512xbf16, #tpu.memory_space<vmem>>, vector<512x512xbf16>
    %cst_22 = arith.constant dense<0.000000e+00> : vector<16x512xf32>
    %35 = tpu.matmul %33, %34, %cst_22 {dimension_numbers = #tpu.dot_dimension_numbers<[1], [0], [0], [1], [0, 0, 1, 1], [], []>} : vector<16x512xbf16>, vector<512x512xbf16>, vector<16x512xf32> -> vector<16x512xf32>
    %36 = arith.addf %32, %35 : vector<16x512xf32>
    %c0_23 = arith.constant 0 : index
    %c0_24 = arith.constant 0 : index
    %37 = vector.load %arg8[%c0_23, %c0_24] : memref<16x512xf32, #tpu.memory_space<vmem>>, vector<16x512xf32>
    tpu.vector_store %arg8[%c0_23, %c0_24], %36 {strides = array<i32>} : memref<16x512xf32, #tpu.memory_space<vmem>>, vector<16x512xf32>,
    return
  }
  func.func @transform_0(%arg0: i32, %arg1: i32) -> (i32, i32) {
    %c0_i32 = arith.constant 0 : i32
    %c0_i32_0 = arith.constant 0 : i32
    %c0_i32_1 = arith.constant 0 : i32
    return %c0_i32, %c0_i32_0 : i32, i32
  }
  func.func @transform_1(%arg0: i32, %arg1: i32) -> (i32, i32) {
    %c4_i32 = arith.constant 4 : i32
    %0 = arith.muli %arg0, %c4_i32 : i32
    %1 = arith.addi %0, %arg1 : i32
    %c0_i32 = arith.constant 0 : i32
    %c0_i32_0 = arith.constant 0 : i32
    return %c0_i32, %1 : i32, i32
  }
  func.func @transform_2(%arg0: i32, %arg1: i32) -> (i32, i32, i32) {
    %c4_i32 = arith.constant 4 : i32
    %0 = arith.muli %arg0, %c4_i32 : i32
    %1 = arith.addi %0, %arg1 : i32
    %c0_i32 = arith.constant 0 : i32
    %c0_i32_0 = arith.constant 0 : i32
    %c0_i32_1 = arith.constant 0 : i32
    return %1, %c0_i32, %c0_i32_0 : i32, i32, i32
  }
  func.func @transform_3(%arg0: i32, %arg1: i32) -> (i32, i32, i32) {
    %c4_i32 = arith.constant 4 : i32
    %0 = arith.muli %arg0, %c4_i32 : i32
    %1 = arith.addi %0, %arg1 : i32
    %c0_i32 = arith.constant 0 : i32
    %c0_i32_0 = arith.constant 0 : i32
    %c0_i32_1 = arith.constant 0 : i32
    return %1, %c0_i32, %c0_i32_0 : i32, i32, i32
  }
  func.func @transform_4(%arg0: i32, %arg1: i32) -> (i32, i32) {
    %c0_i32 = arith.constant 0 : i32
    %c0_i32_0 = arith.constant 0 : i32
    %c0_i32_1 = arith.constant 0 : i32
    return %c0_i32, %c0_i32_0 : i32, i32
  }
  func.func @transform_5(%arg0: i32, %arg1: i32) -> (i32, i32) {
    %c4_i32 = arith.constant 4 : i32
    %0 = arith.muli %arg0, %c4_i32 : i32
    %1 = arith.addi %0, %arg1 : i32
    %c0_i32 = arith.constant 0 : i32
    %c0_i32_0 = arith.constant 0 : i32
    return %1, %c0_i32 : i32, i32
  }
  func.func @transform_6(%arg0: i32, %arg1: i32) -> (i32, i32) {
    %c0_i32 = arith.constant 0 : i32
    %c0_i32_0 = arith.constant 0 : i32
    return %arg0, %c0_i32 : i32, i32
  }
}

</mosaic_0001>

<llo_original>
// kernel: tpu_custom_call.1
$region0: #{tpu_custom_call.1}
  #allocation0 [shape = 'u32[]', space=smem, size = 0x4, offset = 0x4, fixed_abs, tag = 'smem constant byte address 0x4 - core index']
  #allocation1 [shape = 'u32[72,128]{1,0:T(1,128)}', space=vmem, size = 0x9000, scoped, tag = 'internal scratch']
  %s0 = inlined_call_operand.hbm [shape: bf16[16,128], index: 0, kind: input, shape index: {}]
  %s1 = inlined_call_operand.hbm [shape: bf16[128,4096], index: 1, kind: input, shape index: {}]
  %s2 = inlined_call_operand.vmem [shape: f32[8,16,1], index: 2, kind: input, shape index: {}]
  %s3 = inlined_call_operand.hbm [shape: f32[8,1,16], index: 3, kind: input, shape index: {}]
  %s4 = inlined_call_operand.hbm [shape: f32[16,16], index: 4, kind: input, shape index: {}]
  %s5 = inlined_call_operand.hbm [shape: bf16[4096,512], index: 5, kind: input, shape index: {}]
  %s6 = inlined_call_operand.hbm [shape: f32[32,512], index: 6, kind: output, shape index: {}]
  %s7 = sld [smem:[#allocation0]]
  $region81: #{tpu_custom_call.1} parent=0
    _
  %s9 = ssub.s32 1, %s7
  %s10 = scalar_select 0, %s9, %s7
  $region1: #{tpu_custom_call.1} parent=0
    #allocation2 [shape = 'u8[4096]{0}', space=vmem, size = 0x1000, scoped, tag = 'input window, operand 0, single buffered']
    #allocation3 [shape = 's32[2]{0}', space=sflag, size = 0x8, scoped, tag = 'scoped memory for tpu_custom_call.1']
    #allocation4 [shape = 's32[2]{0}', space=sflag, size = 0x8, scoped, tag = 'scoped memory for tpu_custom_call.1']
    #allocation5 [shape = 'u8[262144]{0}', space=vmem, size = 0x40000, scoped, tag = 'input window, operand 1']
    #allocation6 [shape = 's32[2]{0}', space=sflag, size = 0x8, scoped, tag = 'scoped memory for tpu_custom_call.1']
    #allocation7 [shape = 'u8[1024]{0}', space=vmem, size = 0x400, scoped, tag = 'input window, operand 3']
    #allocation8 [shape = 'u8[8192]{0}', space=vmem, size = 0x2000, scoped, tag = 'input window, operand 4, single buffered']
    #allocation9 [shape = 's32[1]{0}', space=sflag, size = 0x4, scoped, tag = 'scoped memory for tpu_custom_call.1']
    #allocation10 [shape = 'u8[1048576]{0}', space=vmem, size = 0x100000, scoped, tag = 'input window, operand 5']
    #allocation11 [shape = 'u8[65536]{0}', space=vmem, size = 0x10000, scoped, tag = 'output window, operand 0']
    %11 = vsyncpa [#allocation3], 0
    %12 = vsyncpa [#allocation6], 0
    %s13 = scalar_lea.sflag [#allocation6], 1
    %14 = vsyncpa %s13, 0
    %15 = vsyncpa [#allocation9], 0
    %16 = vsyncpa [#allocation4], 0
    %s17 = scalar_lea.sflag [#allocation4], 1
    %18 = vsyncpa %s17, 0
    loop: start=0, step=1, limit=10
    $region2: #{tpu_custom_call.1} parent=1 // loop_pre_header
      _
    $region3: #{tpu_custom_call.1} parent=1 // loop_header
      %s20 = sphi 0, %s24
      %p21 = scmp.ge.s32.totalorder %s20, 10
      %s27 = sphi 0, %s39
      %s28 = sphi 0, %s35
      %s29 = sphi 0, %s27
      %s30 = sphi 0, %s28
      %s31 = sphi 0, %s29
      %s32 = sphi 0, %s30
      %s40 = sphi 0, %s40
      %s42 = sphi 0, %s40
      %s43 = sphi 0, %s42
      %s57 = sphi 0, %s43
      %s67 = sphi 0, %s69
      %s70 = sphi 0, %s67
      %s71 = sphi 0, %s70
      %s87 = sphi 0, %s71
      %s97 = sphi 0, %s99
      %s100 = sphi 0, %s97
      %s101 = sphi 0, %s100
      %s117 = sphi 0, %s101
      %s127 = sphi 0, %s129
      %s130 = sphi 0, %s127
      %s131 = sphi 0, %s130
      %s147 = sphi 0, %s131
      %s151 = sphi 0, %s151
      %s153 = sphi 0, %s151
      %s154 = sphi 0, %s153
      %s168 = sphi 0, %s154
      %s178 = sphi 0, %s180
      %s181 = sphi 0, %s178
      %s182 = sphi 0, %s181
      %s198 = sphi 0, %s182
      %s204 = sphi 0, %s206
      %s207 = sphi 0, %s204
      %s208 = sphi 0, %s207
      %s224 = sphi 0, %s208
    $region4: #{tpu_custom_call.1} parent=1 // loop_header_branch
      %23 = sbr.rel (%p21) target = $region8
    $region5: #{tpu_custom_call.1} parent=1 // loop_body
      %s25 = ssub.s32 %s20, 1
      %s26 = ssub.s32 %s20, 2
      %s33 = sadd.s32 1, %s28
      %p34 = scmp.ge.s32.totalorder %s33, 4
      %s35 = scalar_select %p34, 0, %s33
      %s36 = sadd.s32 1, %s27
      %s37 = scalar_select %p34, %s36, %s27
      %p38 = scmp.ge.s32.totalorder %s37, 2
      %s39 = scalar_select %p38, 0, %s37
      %s41 = sadd.s32 %s40, 1
      %p44 = scmp.eq.s32.totalorder %s20, 7
      %p45 = scmp.ne.s32.totalorder %s40, %s42
      %p46 = scmp.eq.s32.totalorder %s20, 0
      %p47 = por %p45, %p46
      %p48 = scmp.ne.s32.totalorder %s40, %s42
      %p49 = scmp.eq.s32.totalorder %s25, 7
      %p50 = por %p48, %p49
      %p51 = scmp.ne.s32.totalorder %s42, %s43
      %p52 = scmp.eq.s32.totalorder %s25, 0
      %p53 = por %p51, %p52
      %p54 = scmp.ne.s32.totalorder %s42, %s43
      %p55 = scmp.eq.s32.totalorder %s26, 7
      %p56 = por %p54, %p55
      %p58 = scmp.ne.s32.totalorder %s43, %s57
      %p59 = scmp.eq.s32.totalorder %s26, 0
      %p60 = por %p58, %p59
      %s61 = smul.u32 %s27, 4
      %s62 = sadd.s32 %s61, %s28
      %s63 = smul.u32 %s39, 4
      %s64 = sadd.s32 %s63, %s35
      %s65 = ssub.s32 %s62, %s64
      %p66 = scmp.eq.s32.totalorder %s65, 0
      %s68 = sadd.s32 %s67, 1
      %s69 = scalar_select %p66, %s67, %s68
      %p72 = pneg %p66
      %p73 = scmp.eq.s32.totalorder %s20, 7
      %p74 = por %p72, %p73
      %p75 = scmp.ne.s32.totalorder %s67, %s70
      %p76 = scmp.eq.s32.totalorder %s20, 0
      %p77 = por %p75, %p76
      %p78 = scmp.ne.s32.totalorder %s67, %s70
      %p79 = scmp.eq.s32.totalorder %s25, 7
      %p80 = por %p78, %p79
      %p81 = scmp.ne.s32.totalorder %s70, %s71
      %p82 = scmp.eq.s32.totalorder %s25, 0
      %p83 = por %p81, %p82
      %p84 = scmp.ne.s32.totalorder %s70, %s71
      %p85 = scmp.eq.s32.totalorder %s26, 7
      %p86 = por %p84, %p85
      %p88 = scmp.ne.s32.totalorder %s71, %s87
      %p89 = scmp.eq.s32.totalorder %s26, 0
      %p90 = por %p88, %p89
      %s91 = smul.u32 %s27, 4
      %s92 = sadd.s32 %s91, %s28
      %s93 = smul.u32 %s39, 4
      %s94 = sadd.s32 %s93, %s35
      %s95 = ssub.s32 %s92, %s94
      %p96 = scmp.eq.s32.totalorder %s95, 0
      %s98 = sadd.s32 %s97, 1
      %s99 = scalar_select %p96, %s97, %s98
      %p102 = pneg %p96
      %p103 = scmp.eq.s32.totalorder %s20, 7
      %p104 = por %p102, %p103
      %p105 = scmp.ne.s32.totalorder %s97, %s100
      %p106 = scmp.eq.s32.totalorder %s20, 0
      %p107 = por %p105, %p106
      %p108 = scmp.ne.s32.totalorder %s97, %s100
      %p109 = scmp.eq.s32.totalorder %s25, 7
      %p110 = por %p108, %p109
      %p111 = scmp.ne.s32.totalorder %s100, %s101
      %p112 = scmp.eq.s32.totalorder %s25, 0
      %p113 = por %p111, %p112
      %p114 = scmp.ne.s32.totalorder %s100, %s101
      %p115 = scmp.eq.s32.totalorder %s26, 7
      %p116 = por %p114, %p115
      %p118 = scmp.ne.s32.totalorder %s101, %s117
      %p119 = scmp.eq.s32.totalorder %s26, 0
      %p120 = por %p118, %p119
      %s121 = smul.u32 %s27, 4
      %s122 = sadd.s32 %s121, %s28
      %s123 = smul.u32 %s39, 4
      %s124 = sadd.s32 %s123, %s35
      %s125 = ssub.s32 %s122, %s124
      %p126 = scmp.eq.s32.totalorder %s125, 0
      %s128 = sadd.s32 %s127, 1
      %s129 = scalar_select %p126, %s127, %s128
      %p132 = pneg %p126
      %p133 = scmp.eq.s32.totalorder %s20, 7
      %p134 = por %p132, %p133
      %p135 = scmp.ne.s32.totalorder %s127, %s130
      %p136 = scmp.eq.s32.totalorder %s20, 0
      %p137 = por %p135, %p136
      %p138 = scmp.ne.s32.totalorder %s127, %s130
      %p139 = scmp.eq.s32.totalorder %s25, 7
      %p140 = por %p138, %p139
      %p141 = scmp.ne.s32.totalorder %s130, %s131
      %p142 = scmp.eq.s32.totalorder %s25, 0
      %p143 = por %p141, %p142
      %p144 = scmp.ne.s32.totalorder %s130, %s131
      %p145 = scmp.eq.s32.totalorder %s26, 7
      %p146 = por %p144, %p145
      %p148 = scmp.ne.s32.totalorder %s131, %s147
      %p149 = scmp.eq.s32.totalorder %s26, 0
      %p150 = por %p148, %p149
      %s152 = sadd.s32 %s151, 1
      %p155 = scmp.eq.s32.totalorder %s20, 7
      %p156 = scmp.ne.s32.totalorder %s151, %s153
      %p157 = scmp.eq.s32.totalorder %s20, 0
      %p158 = por %p156, %p157
      %p159 = scmp.ne.s32.totalorder %s151, %s153
      %p160 = scmp.eq.s32.totalorder %s25, 7
      %p161 = por %p159, %p160
      %p162 = scmp.ne.s32.totalorder %s153, %s154
      %p163 = scmp.eq.s32.totalorder %s25, 0
      %p164 = por %p162, %p163
      %p165 = scmp.ne.s32.totalorder %s153, %s154
      %p166 = scmp.eq.s32.totalorder %s26, 7
      %p167 = por %p165, %p166
      %p169 = scmp.ne.s32.totalorder %s154, %s168
      %p170 = scmp.eq.s32.totalorder %s26, 0
      %p171 = por %p169, %p170
      %s172 = smul.u32 %s27, 4
      %s173 = sadd.s32 %s172, %s28
      %s174 = smul.u32 %s39, 4
      %s175 = sadd.s32 %s174, %s35
      %s176 = ssub.s32 %s173, %s175
      %p177 = scmp.eq.s32.totalorder %s176, 0
      %s179 = sadd.s32 %s178, 1
      %s180 = scalar_select %p177, %s178, %s179
      %p183 = pneg %p177
      %p184 = scmp.eq.s32.totalorder %s20, 7
      %p185 = por %p183, %p184
      %p186 = scmp.ne.s32.totalorder %s178, %s181
      %p187 = scmp.eq.s32.totalorder %s20, 0
      %p188 = por %p186, %p187
      %p189 = scmp.ne.s32.totalorder %s178, %s181
      %p190 = scmp.eq.s32.totalorder %s25, 7
      %p191 = por %p189, %p190
      %p192 = scmp.ne.s32.totalorder %s181, %s182
      %p193 = scmp.eq.s32.totalorder %s25, 0
      %p194 = por %p192, %p193
      %p195 = scmp.ne.s32.totalorder %s181, %s182
      %p196 = scmp.eq.s32.totalorder %s26, 7
      %p197 = por %p195, %p196
      %p199 = scmp.ne.s32.totalorder %s182, %s198
      %p200 = scmp.eq.s32.totalorder %s26, 0
      %p201 = por %p199, %p200
      %s202 = ssub.s32 %s27, %s39
      %p203 = scmp.eq.s32.totalorder %s202, 0
      %s205 = sadd.s32 %s204, 1
      %s206 = scalar_select %p203, %s204, %s205
      %p209 = pneg %p203
      %p210 = scmp.eq.s32.totalorder %s20, 7
      %p211 = por %p209, %p210
      %p212 = scmp.ne.s32.totalorder %s204, %s207
      %p213 = scmp.eq.s32.totalorder %s20, 0
      %p214 = por %p212, %p213
      %p215 = scmp.ne.s32.totalorder %s204, %s207
      %p216 = scmp.eq.s32.totalorder %s25, 7
      %p217 = por %p215, %p216
      %p218 = scmp.ne.s32.totalorder %s207, %s208
      %p219 = scmp.eq.s32.totalorder %s25, 0
      %p220 = por %p218, %p219
      %p221 = scmp.ne.s32.totalorder %s207, %s208
      %p222 = scmp.eq.s32.totalorder %s26, 7
      %p223 = por %p221, %p222
      %p225 = scmp.ne.s32.totalorder %s208, %s224
      %p226 = scmp.eq.s32.totalorder %s26, 0
      %p227 = por %p225, %p226
      %p228 = scmp.le.s32.totalorder 1, %s20
      %p229 = scmp.lt.s32.totalorder %s20, 9
      %p230 = pnand %p228, %p229
      %p231 = pneg %p230
      // Predicated region
      $region9: #{tpu_custom_call.1} parent=5 // pred_check
        _
      $region10: #{tpu_custom_call.1} parent=5 // pred_check_branch
        %233 = sbr.rel (%p230) target = $region12
      $region11: #{tpu_custom_call.1} parent=5 // pred_region
        %s234 = ssub.s32 %s20, 1
        // Predicated region
        $region13: #{tpu_custom_call.1} parent=11 // pred_check
          %p235 = pneg %p53
        $region14: #{tpu_custom_call.1} parent=11 // pred_check_branch
          %237 = sbr.rel (%p235) target = $region16
        $region15: #{tpu_custom_call.1} parent=11 // pred_region
          %239 = vsyncadd [#allocation3], 0
          %s240 = sshll.u32 %s0, 4
          %s241 = int_to_ptr.hbm [resolvable:$true] %s240
          %s242 = sshll.u32 [#allocation2], 4
          %s243 = int_to_ptr.vmem [resolvable:$true] %s242
          %248 = dma.hbm_to_vmem [thread:$0]  %s241, 128, %s243, [#allocation3], 64, 64, 4
        $region16: #{tpu_custom_call.1} parent=11 // pred_fallthru
          _
        // Predicated region
        $region17: #{tpu_custom_call.1} parent=11 // pred_check
          %p249 = pneg %p164
        $region18: #{tpu_custom_call.1} parent=11 // pred_check_branch
          %251 = sbr.rel (%p249) target = $region20
        $region19: #{tpu_custom_call.1} parent=11 // pred_region
          %253 = vsyncadd [#allocation9], 0
          %s254 = sshll.u32 %s4, 4
          %s255 = int_to_ptr.hbm [resolvable:$true] %s254
          %s256 = sshll.u32 [#allocation8], 4
          %s257 = int_to_ptr.vmem [resolvable:$true] %s256
          %262 = dma.hbm_to_vmem [thread:$0]  %s255, 256, %s257, [#allocation9], 128, 128, 8
        $region20: #{tpu_custom_call.1} parent=11 // pred_fallthru
          _
      $region12: #{tpu_custom_call.1} parent=5 // pred_fallthru
        _
      %p263 = scmp.lt.s32.totalorder %s20, 8
      // Predicated region
      $region21: #{tpu_custom_call.1} parent=5 // pred_check
        %p264 = pneg %p263
      $region22: #{tpu_custom_call.1} parent=5 // pred_check_branch
        %266 = sbr.rel (%p264) target = $region24
      $region23: #{tpu_custom_call.1} parent=5 // pred_region
        // Predicated region
        $region25: #{tpu_custom_call.1} parent=23 // pred_check
          %p267 = pneg %p77
        $region26: #{tpu_custom_call.1} parent=23 // pred_check_branch
          %269 = sbr.rel (%p267) target = $region28
        $region27: #{tpu_custom_call.1} parent=23 // pred_region
          %s270 = sand.u32 %s20, 1
          %s271 = scalar_lea.sflag [#allocation6], %s270
          %s272 = sand.u32 %s67, 1
          %s273 = smul.addr %s272, 256
          %s274 = scalar_lea.vmem [#allocation5], %s273
          %s275 = smul.u32 %s27, 4
          %s276 = sadd.s32 %s275, %s28
          %s277 = smul.u32 4, %s276
          %279 = vsyncadd %s271, 0
          %s280 = smul.addr %s277, 4
          %s281 = scalar_lea.hbm %s1, %s280
          %s282 = sshll.u32 %s281, 4
          %s283 = int_to_ptr.hbm [resolvable:$true] %s282
          %s284 = sshll.u32 %s274, 4
          %s285 = int_to_ptr.vmem [resolvable:$true] %s284
          %290 = dma.hbm_to_vmem [thread:$0]  %s283, 4096, %s285, %s271, 2048, 256, 16
        $region28: #{tpu_custom_call.1} parent=23 // pred_fallthru
          _
        // Predicated region
        $region29: #{tpu_custom_call.1} parent=23 // pred_check
          %p291 = pneg %p107
        $region30: #{tpu_custom_call.1} parent=23 // pred_check_branch
          %293 = sbr.rel (%p291) target = $region32
        $region31: #{tpu_custom_call.1} parent=23 // pred_region
          %s294 = smul.u32 %s27, 4
          %s295 = sadd.s32 %s294, %s28
          %p296 = scmp.lt.s32.totalorder %s295, 7
          %s297 = scalar_select %p296, %s295, 7
          %s298 = smul.addr %s297, 2
          %s299 = smul.addr %s298, 8
          %s300 = scalar_lea.vmem %s2, %s299
          %s301 = smul.u32 %s27, 4
          %s302 = sadd.s32 %s301, %s28
        $region32: #{tpu_custom_call.1} parent=23 // pred_fallthru
          _
        // Predicated region
        $region33: #{tpu_custom_call.1} parent=23 // pred_check
          %p303 = pneg %p137
        $region34: #{tpu_custom_call.1} parent=23 // pred_check_branch
          %305 = sbr.rel (%p303) target = $region36
        $region35: #{tpu_custom_call.1} parent=23 // pred_region
          %s306 = sand.u32 %s20, 1
          %s307 = scalar_lea.sflag [#allocation6], %s306
          %s308 = sand.u32 %s127, 1
          %s309 = scalar_lea.vmem [#allocation7], %s308
          %s310 = smul.u32 %s27, 4
          %s311 = sadd.s32 %s310, %s28
          %313 = vsyncadd %s307, 0
          %s314 = scalar_lea.hbm %s3, %s311
          %s316 = sshll.u32 %s314, 4
          %s317 = int_to_ptr.hbm [resolvable:$true] %s316
          %s318 = sshll.u32 %s309, 4
          %s319 = int_to_ptr.vmem [resolvable:$true] %s318
          %321 = dma.hbm_to_vmem [thread:$0]  %s317, 16, %s319, %s307
        $region36: #{tpu_custom_call.1} parent=23 // pred_fallthru
          _
        // Predicated region
        $region37: #{tpu_custom_call.1} parent=23 // pred_check
          %p322 = pneg %p188
        $region38: #{tpu_custom_call.1} parent=23 // pred_check_branch
          %324 = sbr.rel (%p322) target = $region40
        $region39: #{tpu_custom_call.1} parent=23 // pred_region
          %s325 = sand.u32 %s20, 1
          %s326 = scalar_lea.sflag [#allocation3], %s325
          %s327 = sand.u32 %s178, 1
          %s328 = smul.addr %s327, 1024
          %s329 = scalar_lea.vmem [#allocation10], %s328
          %s330 = smul.u32 %s27, 4
          %s331 = sadd.s32 %s330, %s28
          %s332 = smul.u32 64, %s331
          %334 = vsyncadd %s326, 0
          %s335 = smul.addr %s332, 4
          %s336 = smul.addr %s335, 4
          %s337 = scalar_lea.hbm %s5, %s336
          %s338 = sshll.u32 %s337, 4
          %s339 = int_to_ptr.hbm [resolvable:$true] %s338
          %s340 = sshll.u32 %s329, 4
          %s341 = int_to_ptr.vmem [resolvable:$true] %s340
          %346 = dma.hbm_to_vmem [thread:$0]  %s339, 16384, %s341, %s326, 256, 256, 16
        $region40: #{tpu_custom_call.1} parent=23 // pred_fallthru
          _
      $region24: #{tpu_custom_call.1} parent=5 // pred_fallthru
        _
      %p347 = scmp.le.s32.totalorder 1, %s20
      %p348 = scmp.lt.s32.totalorder %s20, 9
      %p349 = pnand %p347, %p348
      %p350 = pneg %p349
      // Predicated region
      $region41: #{tpu_custom_call.1} parent=5 // pred_check
        _
      $region42: #{tpu_custom_call.1} parent=5 // pred_check_branch
        %352 = sbr.rel (%p349) target = $region44
      $region43: #{tpu_custom_call.1} parent=5 // pred_region
        %s353 = ssub.s32 %s20, 1
        // Predicated region
        $region45: #{tpu_custom_call.1} parent=43 // pred_check
          %p354 = pneg %p53
        $region46: #{tpu_custom_call.1} parent=43 // pred_check_branch
          %356 = sbr.rel (%p354) target = $region48
        $region47: #{tpu_custom_call.1} parent=43 // pred_region
          %358 = dma.done [#allocation3], 128
        $region48: #{tpu_custom_call.1} parent=43 // pred_fallthru
          _
        %s359 = sand.u32 %s25, 1
        %s360 = scalar_lea.sflag [#allocation6], %s359
        %s361 = sand.u32 %s70, 1
        %s362 = smul.addr %s361, 256
        %s363 = scalar_lea.vmem [#allocation5], %s362
        // Predicated region
        $region49: #{tpu_custom_call.1} parent=43 // pred_check
          %p364 = pneg %p83
        $region50: #{tpu_custom_call.1} parent=43 // pred_check_branch
          %366 = sbr.rel (%p364) target = $region52
        $region51: #{tpu_custom_call.1} parent=43 // pred_region
          %368 = dma.done %s360, 4096
        $region52: #{tpu_custom_call.1} parent=43 // pred_fallthru
          _
        %s369 = sand.u32 %s25, 1
        %s370 = scalar_lea.sflag [#allocation6], %s369
        %s371 = sand.u32 %s130, 1
        %s372 = scalar_lea.vmem [#allocation7], %s371
        // Predicated region
        $region53: #{tpu_custom_call.1} parent=43 // pred_check
          %p373 = pneg %p143
        $region54: #{tpu_custom_call.1} parent=43 // pred_check_branch
          %375 = sbr.rel (%p373) target = $region56
        $region55: #{tpu_custom_call.1} parent=43 // pred_region
          %377 = dma.done %s370, 16
        $region56: #{tpu_custom_call.1} parent=43 // pred_fallthru
          _
        // Predicated region
        $region57: #{tpu_custom_call.1} parent=43 // pred_check
          %p378 = pneg %p164
        $region58: #{tpu_custom_call.1} parent=43 // pred_check_branch
          %380 = sbr.rel (%p378) target = $region60
        $region59: #{tpu_custom_call.1} parent=43 // pred_region
          %382 = dma.done [#allocation9], 256
        $region60: #{tpu_custom_call.1} parent=43 // pred_fallthru
          _
        %s383 = sand.u32 %s25, 1
        %s384 = scalar_lea.sflag [#allocation3], %s383
        %s385 = sand.u32 %s181, 1
        %s386 = smul.addr %s385, 1024
        %s387 = scalar_lea.vmem [#allocation10], %s386
        // Predicated region
        $region61: #{tpu_custom_call.1} parent=43 // pred_check
          %p388 = pneg %p194
        $region62: #{tpu_custom_call.1} parent=43 // pred_check_branch
          %390 = sbr.rel (%p388) target = $region64
        $region63: #{tpu_custom_call.1} parent=43 // pred_region
          %392 = dma.done %s384, 16384
        $region64: #{tpu_custom_call.1} parent=43 // pred_fallthru
          _
        %p393 = pneg %p53
        %p394 = pneg %p50
        %s395 = sand.u32 %s25, 1
        %s396 = scalar_lea.sflag [#allocation6], %s395
        %s397 = sand.u32 %s70, 1
        %s398 = smul.addr %s397, 256
        %s399 = scalar_lea.vmem [#allocation5], %s398
        %p400 = pneg %p83
        %p401 = pneg %p80
        %s402 = smul.u32 %s29, 4
        %s403 = sadd.s32 %s402, %s30
        %p404 = scmp.lt.s32.totalorder %s403, 7
        %s405 = scalar_select %p404, %s403, 7
        %s406 = smul.addr %s405, 2
        %s407 = smul.addr %s406, 8
        %s408 = scalar_lea.vmem %s2, %s407
        %p409 = pneg %p113
        %p410 = pneg %p110
        %s411 = sand.u32 %s25, 1
        %s412 = scalar_lea.sflag [#allocation6], %s411
        %s413 = sand.u32 %s130, 1
        %s414 = scalar_lea.vmem [#allocation7], %s413
        %p415 = pneg %p143
        %p416 = pneg %p140
        %p417 = pneg %p164
        %p418 = pneg %p161
        %s419 = sand.u32 %s25, 1
        %s420 = scalar_lea.sflag [#allocation3], %s419
        %s421 = sand.u32 %s181, 1
        %s422 = smul.addr %s421, 1024
        %s423 = scalar_lea.vmem [#allocation10], %s422
        %p424 = pneg %p194
        %p425 = pneg %p191
        %p426 = pneg %p220
        %p427 = pneg %p217
        %s428 = sand.u32 %s207, 1
        %s429 = scalar_lea.sflag [#allocation4], %s428
        %s430 = sand.u32 %s207, 1
        %s431 = smul.addr %s430, 64
        %s432 = scalar_lea.vmem [#allocation11], %s431
        %s433 = smul.u32 %s29, 4
        %s434 = sadd.s32 %s433, %s30
        %s435 = smul.u32 4, %s434
        %s436 = smul.u32 %s29, 4
        %s437 = sadd.s32 %s436, %s30
        %p438 = scmp.lt.s32.totalorder %s437, 7
        %s439 = scalar_select %p438, %s437, 7
        %s440 = smul.addr %s439, 2
        %s441 = smul.addr %s440, 8
        %s442 = scalar_lea.vmem %s2, %s441
        %s443 = smul.u32 %s29, 4
        %s444 = sadd.s32 %s443, %s30
        %s445 = smul.u32 %s29, 4
        %s446 = sadd.s32 %s445, %s30
        %s447 = smul.u32 %s29, 4
        %s448 = sadd.s32 %s447, %s30
        %s449 = smul.u32 64, %s448
        %s450 = smul.u32 2, %s29
        %p451 = scmp.eq.s32.totalorder %s30, 0
        // Predicated region
        $region65: #{tpu_custom_call.1} parent=43 // pred_check
          %p452 = pneg %p451
        $region66: #{tpu_custom_call.1} parent=43 // pred_check_branch
          %454 = sbr.rel (%p452) target = $region68
        $region67: #{tpu_custom_call.1} parent=43 // pred_region
          %455 = vst [vmem:[%s432] sm:$0xff] 0.0
          %456 = vst [vmem:[%s432 + $0x8] sm:$0xff] 0.0
          %457 = vst [vmem:[%s432 + $0x10] sm:$0xff] 0.0
          %458 = vst [vmem:[%s432 + $0x18] sm:$0xff] 0.0
          %459 = vst [vmem:[%s432 + $0x20] sm:$0xff] 0.0
          %460 = vst [vmem:[%s432 + $0x28] sm:$0xff] 0.0
          %461 = vst [vmem:[%s432 + $0x30] sm:$0xff] 0.0
          %462 = vst [vmem:[%s432 + $0x38] sm:$0xff] 0.0
        $region68: #{tpu_custom_call.1} parent=43 // pred_fallthru
          _
        %v463 = vld [vmem:[#allocation2] sm:$0xf]
        %v464 = vld [vmem:[#allocation2 + $0x4] sm:$0xf]
        %v465 = vld [vmem:[%s363] sm:$0xff]
        %v466 = vld [vmem:[%s363 + $0x8] sm:$0xff]
        %v467 = vld [vmem:[%s363 + $0x10] sm:$0xff]
        %v468 = vld [vmem:[%s363 + $0x18] sm:$0xff]
        %v469 = vld [vmem:[%s363 + $0x20] sm:$0xff]
        %v470 = vld [vmem:[%s363 + $0x28] sm:$0xff]
        %v471 = vld [vmem:[%s363 + $0x30] sm:$0xff]
        %v472 = vld [vmem:[%s363 + $0x38] sm:$0xff]
        %v473 = vld [vmem:[%s363 + $0x40] sm:$0xff]
        %v474 = vld [vmem:[%s363 + $0x48] sm:$0xff]
        %v475 = vld [vmem:[%s363 + $0x50] sm:$0xff]
        %v476 = vld [vmem:[%s363 + $0x58] sm:$0xff]
        %v477 = vld [vmem:[%s363 + $0x60] sm:$0xff]
        %v478 = vld [vmem:[%s363 + $0x68] sm:$0xff]
        %v479 = vld [vmem:[%s363 + $0x70] sm:$0xff]
        %v480 = vld [vmem:[%s363 + $0x78] sm:$0xff]
        %v481 = vld [vmem:[%s363 + $0x80] sm:$0xff]
        %v482 = vld [vmem:[%s363 + $0x88] sm:$0xff]
        %v483 = vld [vmem:[%s363 + $0x90] sm:$0xff]
        %v484 = vld [vmem:[%s363 + $0x98] sm:$0xff]
        %v485 = vld [vmem:[%s363 + $0xa0] sm:$0xff]
        %v486 = vld [vmem:[%s363 + $0xa8] sm:$0xff]
        %v487 = vld [vmem:[%s363 + $0xb0] sm:$0xff]
        %v488 = vld [vmem:[%s363 + $0xb8] sm:$0xff]
        %v489 = vld [vmem:[%s363 + $0xc0] sm:$0xff]
        %v490 = vld [vmem:[%s363 + $0xc8] sm:$0xff]
        %v491 = vld [vmem:[%s363 + $0xd0] sm:$0xff]
        %v492 = vld [vmem:[%s363 + $0xd8] sm:$0xff]
        %v493 = vld [vmem:[%s363 + $0xe0] sm:$0xff]
        %v494 = vld [vmem:[%s363 + $0xe8] sm:$0xff]
        %v495 = vld [vmem:[%s363 + $0xf0] sm:$0xff]
        %v496 = vld [vmem:[%s363 + $0xf8] sm:$0xff]
        %v499 = vunpack.c.l.b16 %v463
        %v500 = vunpack.c.l.b16 %v464
        %v501 = vpack.c.b16 %v500, %v499
        %v535 = vunpack.c.l.b16 %v465
        %v536 = vunpack.c.h.b16 %v465
        %v537 = vunpack.c.l.b16 %v466
        %v538 = vunpack.c.h.b16 %v466
        %v539 = vunpack.c.l.b16 %v467
        %v540 = vunpack.c.h.b16 %v467
        %v541 = vunpack.c.l.b16 %v468
        %v542 = vunpack.c.h.b16 %v468
        %v543 = vunpack.c.l.b16 %v469
        %v544 = vunpack.c.h.b16 %v469
        %v545 = vunpack.c.l.b16 %v470
        %v546 = vunpack.c.h.b16 %v470
        %v547 = vunpack.c.l.b16 %v471
        %v548 = vunpack.c.h.b16 %v471
        %v549 = vunpack.c.l.b16 %v472
        %v550 = vunpack.c.h.b16 %v472
        %v551 = vunpack.c.l.b16 %v473
        %v552 = vunpack.c.h.b16 %v473
        %v553 = vunpack.c.l.b16 %v474
        %v554 = vunpack.c.h.b16 %v474
        %v555 = vunpack.c.l.b16 %v475
        %v556 = vunpack.c.h.b16 %v475
        %v557 = vunpack.c.l.b16 %v476
        %v558 = vunpack.c.h.b16 %v476
        %v559 = vunpack.c.l.b16 %v477
        %v560 = vunpack.c.h.b16 %v477
        %v561 = vunpack.c.l.b16 %v478
        %v562 = vunpack.c.h.b16 %v478
        %v563 = vunpack.c.l.b16 %v479
        %v564 = vunpack.c.h.b16 %v479
        %v565 = vunpack.c.l.b16 %v480
        %v566 = vunpack.c.h.b16 %v480
        %v567 = vunpack.c.l.b16 %v481
        %v568 = vunpack.c.h.b16 %v481
        %v569 = vunpack.c.l.b16 %v482
        %v570 = vunpack.c.h.b16 %v482
        %v571 = vunpack.c.l.b16 %v483
        %v572 = vunpack.c.h.b16 %v483
        %v573 = vunpack.c.l.b16 %v484
        %v574 = vunpack.c.h.b16 %v484
        %v575 = vunpack.c.l.b16 %v485
        %v576 = vunpack.c.h.b16 %v485
        %v577 = vunpack.c.l.b16 %v486
        %v578 = vunpack.c.h.b16 %v486
        %v579 = vunpack.c.l.b16 %v487
        %v580 = vunpack.c.h.b16 %v487
        %v581 = vunpack.c.l.b16 %v488
        %v582 = vunpack.c.h.b16 %v488
        %v583 = vunpack.c.l.b16 %v489
        %v584 = vunpack.c.h.b16 %v489
        %v585 = vunpack.c.l.b16 %v490
        %v586 = vunpack.c.h.b16 %v490
        %v587 = vunpack.c.l.b16 %v491
        %v588 = vunpack.c.h.b16 %v491
        %v589 = vunpack.c.l.b16 %v492
        %v590 = vunpack.c.h.b16 %v492
        %v591 = vunpack.c.l.b16 %v493
        %v592 = vunpack.c.h.b16 %v493
        %v593 = vunpack.c.l.b16 %v494
        %v594 = vunpack.c.h.b16 %v494
        %v595 = vunpack.c.l.b16 %v495
        %v596 = vunpack.c.h.b16 %v495
        %v597 = vunpack.c.l.b16 %v496
        %v598 = vunpack.c.h.b16 %v496
        %v599 = vpack.c.b16 %v539, %v535
        %v600 = vpack.c.b16 %v540, %v536
        %v601 = vpack.c.b16 %v541, %v537
        %v602 = vpack.c.b16 %v542, %v538
        %v603 = vpack.c.b16 %v547, %v543
        %v604 = vpack.c.b16 %v548, %v544
        %v605 = vpack.c.b16 %v549, %v545
        %v606 = vpack.c.b16 %v550, %v546
        %v607 = vpack.c.b16 %v555, %v551
        %v608 = vpack.c.b16 %v556, %v552
        %v609 = vpack.c.b16 %v557, %v553
        %v610 = vpack.c.b16 %v558, %v554
        %v611 = vpack.c.b16 %v563, %v559
        %v612 = vpack.c.b16 %v564, %v560
        %v613 = vpack.c.b16 %v565, %v561
        %v614 = vpack.c.b16 %v566, %v562
        %v615 = vpack.c.b16 %v571, %v567
        %v616 = vpack.c.b16 %v572, %v568
        %v617 = vpack.c.b16 %v573, %v569
        %v618 = vpack.c.b16 %v574, %v570
        %v619 = vpack.c.b16 %v579, %v575
        %v620 = vpack.c.b16 %v580, %v576
        %v621 = vpack.c.b16 %v581, %v577
        %v622 = vpack.c.b16 %v582, %v578
        %v623 = vpack.c.b16 %v587, %v583
        %v624 = vpack.c.b16 %v588, %v584
        %v625 = vpack.c.b16 %v589, %v585
        %v626 = vpack.c.b16 %v590, %v586
        %v627 = vpack.c.b16 %v595, %v591
        %v628 = vpack.c.b16 %v596, %v592
        %v629 = vpack.c.b16 %v597, %v593
        %v630 = vpack.c.b16 %v598, %v594
        %663 = vmatpush.bf16.msra.mxu0 %v627
        %664 = vmatpush.bf16.msra.mxu0 %v623
        %665 = vmatpush.bf16.msra.mxu0 %v619
        %666 = vmatpush.bf16.msra.mxu0 %v615
        %667 = vmatpush.bf16.msra.mxu0 %v611
        %668 = vmatpush.bf16.msra.mxu0 %v607
        %669 = vmatpush.bf16.msra.mxu0 %v603
        %670 = vmatpush.bf16.msra.mxu0 %v599
        %671 = vmatmul.bf16.gmra.mxu0 %v501
        %v672 = vpop.f32.mrf.mxu0
        %v673 = vadd.f32 0.0, %v672
        %v674 = vpop.f32.mrf.mxu0
        %v675 = vadd.f32 0.0, %v674
        %676 = vdwg.mxu0
        %677 = vmatpush.bf16.msra.mxu0 %v628
        %678 = vmatpush.bf16.msra.mxu0 %v624
        %679 = vmatpush.bf16.msra.mxu0 %v620
        %680 = vmatpush.bf16.msra.mxu0 %v616
        %681 = vmatpush.bf16.msra.mxu0 %v612
        %682 = vmatpush.bf16.msra.mxu0 %v608
        %683 = vmatpush.bf16.msra.mxu0 %v604
        %684 = vmatpush.bf16.msra.mxu0 %v600
        %685 = vmatmul.bf16.gmra.mxu0 %v501
        %v686 = vpop.f32.mrf.mxu0
        %v687 = vadd.f32 0.0, %v686
        %v688 = vpop.f32.mrf.mxu0
        %v689 = vadd.f32 0.0, %v688
        %690 = vdwg.mxu0
        %691 = vmatpush.bf16.msra.mxu0 %v629
        %692 = vmatpush.bf16.msra.mxu0 %v625
        %693 = vmatpush.bf16.msra.mxu0 %v621
        %694 = vmatpush.bf16.msra.mxu0 %v617
        %695 = vmatpush.bf16.msra.mxu0 %v613
        %696 = vmatpush.bf16.msra.mxu0 %v609
        %697 = vmatpush.bf16.msra.mxu0 %v605
        %698 = vmatpush.bf16.msra.mxu0 %v601
        %699 = vmatmul.bf16.gmra.mxu0 %v501
        %v700 = vpop.f32.mrf.mxu0
        %v701 = vadd.f32 0.0, %v700
        %v702 = vpop.f32.mrf.mxu0
        %v703 = vadd.f32 0.0, %v702
        %704 = vdwg.mxu0
        %705 = vmatpush.bf16.msra.mxu0 %v630
        %706 = vmatpush.bf16.msra.mxu0 %v626
        %707 = vmatpush.bf16.msra.mxu0 %v622
        %708 = vmatpush.bf16.msra.mxu0 %v618
        %709 = vmatpush.bf16.msra.mxu0 %v614
        %710 = vmatpush.bf16.msra.mxu0 %v610
        %711 = vmatpush.bf16.msra.mxu0 %v606
        %712 = vmatpush.bf16.msra.mxu0 %v602
        %713 = vmatmul.bf16.gmra.mxu0 %v501
        %v714 = vpop.f32.mrf.mxu0
        %v715 = vadd.f32 0.0, %v714
        %v716 = vpop.f32.mrf.mxu0
        %v717 = vadd.f32 0.0, %v716
        %718 = vdwg.mxu0
        %v719 = vld [vmem:[%s442] sm:$0xff]
        %v720 = vld [vmem:[%s442 + $0x8] sm:$0xff]
        %v721 = vld [vmem:[%s372] sm:$0x1]
        %723 = vset.pattern.permute.xlu0 0
        %724 = vperm.xlu0 %723, %v719
        %v725 = vpop.permute.xlu0 %724
        %728 = vset.pattern.permute.xlu0 0
        %729 = vperm.xlu0 %728, %v720
        %v730 = vpop.permute.xlu0 %729
        %v733 = vperm.slane %v721, 0
        %v735 = vadd.f32 %v725, %v733
        %v736 = vadd.f32 %v730, %v733
        %v737 = vmul.f32 %v735, 0.2
        %v738 = vmul.f32 %v736, 0.2
        %v739 = vmax.f32 %v735, %v737
        %v740 = vmax.f32 %v736, %v738
        %v741 = vld [vmem:[#allocation8] sm:$0xff]
        %v742 = vld [vmem:[#allocation8 + $0x8] sm:$0xff]
        %vm743 = vcmp.gt.f32.partialorder %v741, 0.0
        %vm744 = vcmp.gt.f32.partialorder %v742, 0.0
        %v745 = vsel %vm743, %v739, -1e+30
        %v746 = vsel %vm744, %v740, -1e+30
        %vm747 = vcmask 130048
        %v748 = vsel %vm747, %v745, -inf
        %749 = vmax.xlane.f32.xlu0 %v748
        %v750 = vpop.xlane.xlu0 %749
        %v751 = vsel %vm747, %v746, -inf
        %752 = vmax.xlane.f32.xlu0 %v751
        %v753 = vpop.xlane.xlu0 %752
        %v754 = vsub.f32 %v739, %v750
        %v755 = vsub.f32 %v740, %v753
        %v756 = vmul.f32 %v754, 1.442695
        %v757 = vpow.pop %v756
        %v758 = vmul.f32 %v755, 1.442695
        %v759 = vpow.pop %v758
        %v760 = vmul.f32 %v741, %v757
        %v761 = vmul.f32 %v742, %v759
        %v762 = vsel %vm747, %v760, 0.0
        %763 = vadd.xlane.f32.xlu0 %v762
        %v764 = vpop.xlane.xlu0 %763
        %v765 = vsel %vm747, %v761, 0.0
        %766 = vadd.xlane.f32.xlu0 %v765
        %v767 = vpop.xlane.xlu0 %766
        %v768 = vrcp.pop %v764
        %v769 = vmul.f32 %v764, %v768
        %v770 = vsub.f32 1.0, %v769
        %v771 = vmul.f32 %v768, %v770
        %v772 = vadd.f32 %v768, %v771
        %vm773 = vweird.f32 %v764
        %vm774 = vweird.f32 %v768
        %vm775 = vmor %vm773, %vm774
        %v776 = vsel %vm775, %v768, %v772
        %v777 = vand.u32 2147483647, %v764
        %vm778 = vcmp.eq.f32.partialorder %v777, 8.507059e+37
        %v779 = vand.u32 %v764, 2147483648
        %v780 = vor.u32 1.1754944e-38, %v779
        %v781 = vsel %vm778, %v780, %v776
        %v782 = vmul.f32 %v760, %v781
        %v783 = vrcp.pop %v767
        %v784 = vmul.f32 %v767, %v783
        %v785 = vsub.f32 1.0, %v784
        %v786 = vmul.f32 %v783, %v785
        %v787 = vadd.f32 %v783, %v786
        %vm788 = vweird.f32 %v767
        %vm789 = vweird.f32 %v783
        %vm790 = vmor %vm788, %vm789
        %v791 = vsel %vm790, %v783, %v787
        %v792 = vand.u32 2147483647, %v767
        %vm793 = vcmp.eq.f32.partialorder %v792, 8.507059e+37
        %v794 = vand.u32 %v767, 2147483648
        %v795 = vor.u32 1.1754944e-38, %v794
        %v796 = vsel %vm793, %v795, %v791
        %v797 = vmul.f32 %v761, %v796
        %v799 = vsel %vm747, %v782, 0
        %v802 = vsel %vm747, %v797, 0
        %804 = vmatpush.msra.mxu0 0.0
        %805 = vmatpush.msra.mxu0 0.0
        %806 = vmatpush.msra.mxu0 0.0
        %807 = vmatpush.msra.mxu0 0.0
        %808 = vmatpush.msra.mxu0 0.0
        %809 = vmatpush.msra.mxu0 0.0
        %810 = vmatpush.msra.mxu0 0.0
        %811 = vmatpush.msra.mxu0 0.0
        %812 = vmatpush.msra.mxu0 0.0
        %813 = vmatpush.msra.mxu0 0.0
        %814 = vmatpush.msra.mxu0 0.0
        %815 = vmatpush.msra.mxu0 0.0
        %816 = vmatpush.msra.mxu0 0.0
        %817 = vmatpush.msra.mxu0 0.0
        %818 = vmatpush.msra.mxu0 %v675
        %819 = vmatpush.msra.mxu0 %v673
        %820 = vmatmul.f32.gmra.mxu0 %v799
        %v821 = vpop.f32.mrf.mxu0
        %v822 = vadd.f32 0.0, %v821
        %823 = vmatmul.f32.gmra.mxu0 %v802
        %v824 = vpop.f32.mrf.mxu0
        %v825 = vadd.f32 0.0, %v824
        %826 = vdwg.mxu0
        %827 = vmatpush.msra.mxu0 0.0
        %828 = vmatpush.msra.mxu0 0.0
        %829 = vmatpush.msra.mxu0 0.0
        %830 = vmatpush.msra.mxu0 0.0
        %831 = vmatpush.msra.mxu0 0.0
        %832 = vmatpush.msra.mxu0 0.0
        %833 = vmatpush.msra.mxu0 0.0
        %834 = vmatpush.msra.mxu0 0.0
        %835 = vmatpush.msra.mxu0 0.0
        %836 = vmatpush.msra.mxu0 0.0
        %837 = vmatpush.msra.mxu0 0.0
        %838 = vmatpush.msra.mxu0 0.0
        %839 = vmatpush.msra.mxu0 0.0
        %840 = vmatpush.msra.mxu0 0.0
        %841 = vmatpush.msra.mxu0 %v689
        %842 = vmatpush.msra.mxu0 %v687
        %843 = vmatmul.f32.gmra.mxu0 %v799
        %v844 = vpop.f32.mrf.mxu0
        %v845 = vadd.f32 0.0, %v844
        %846 = vmatmul.f32.gmra.mxu0 %v802
        %v847 = vpop.f32.mrf.mxu0
        %v848 = vadd.f32 0.0, %v847
        %849 = vdwg.mxu0
        %850 = vmatpush.msra.mxu0 0.0
        %851 = vmatpush.msra.mxu0 0.0
        %852 = vmatpush.msra.mxu0 0.0
        %853 = vmatpush.msra.mxu0 0.0
        %854 = vmatpush.msra.mxu0 0.0
        %855 = vmatpush.msra.mxu0 0.0
        %856 = vmatpush.msra.mxu0 0.0
        %857 = vmatpush.msra.mxu0 0.0
        %858 = vmatpush.msra.mxu0 0.0
        %859 = vmatpush.msra.mxu0 0.0
        %860 = vmatpush.msra.mxu0 0.0
        %861 = vmatpush.msra.mxu0 0.0
        %862 = vmatpush.msra.mxu0 0.0
        %863 = vmatpush.msra.mxu0 0.0
        %864 = vmatpush.msra.mxu0 %v703
        %865 = vmatpush.msra.mxu0 %v701
        %866 = vmatmul.f32.gmra.mxu0 %v799
        %v867 = vpop.f32.mrf.mxu0
        %v868 = vadd.f32 0.0, %v867
        %869 = vmatmul.f32.gmra.mxu0 %v802
        %v870 = vpop.f32.mrf.mxu0
        %v871 = vadd.f32 0.0, %v870
        %872 = vdwg.mxu0
        %873 = vmatpush.msra.mxu0 0.0
        %874 = vmatpush.msra.mxu0 0.0
        %875 = vmatpush.msra.mxu0 0.0
        %876 = vmatpush.msra.mxu0 0.0
        %877 = vmatpush.msra.mxu0 0.0
        %878 = vmatpush.msra.mxu0 0.0
        %879 = vmatpush.msra.mxu0 0.0
        %880 = vmatpush.msra.mxu0 0.0
        %881 = vmatpush.msra.mxu0 0.0
        %882 = vmatpush.msra.mxu0 0.0
        %883 = vmatpush.msra.mxu0 0.0
        %884 = vmatpush.msra.mxu0 0.0
        %885 = vmatpush.msra.mxu0 0.0
        %886 = vmatpush.msra.mxu0 0.0
        %887 = vmatpush.msra.mxu0 %v717
        %888 = vmatpush.msra.mxu0 %v715
        %889 = vmatmul.f32.gmra.mxu0 %v799
        %v890 = vpop.f32.mrf.mxu0
        %v891 = vadd.f32 0.0, %v890
        %892 = vmatmul.f32.gmra.mxu0 %v802
        %v893 = vpop.f32.mrf.mxu0
        %v894 = vadd.f32 0.0, %v893
        %895 = vdwg.mxu0
        %v896 = vld [vmem:[%s432] sm:$0xff]
        %v897 = vld [vmem:[%s432 + $0x8] sm:$0xff]
        %v898 = vld [vmem:[%s432 + $0x10] sm:$0xff]
        %v899 = vld [vmem:[%s432 + $0x18] sm:$0xff]
        %v900 = vld [vmem:[%s432 + $0x20] sm:$0xff]
        %v901 = vld [vmem:[%s432 + $0x28] sm:$0xff]
        %v902 = vld [vmem:[%s432 + $0x30] sm:$0xff]
        %v903 = vld [vmem:[%s432 + $0x38] sm:$0xff]
        %v904 = vpack.c.bf16 %v825, %v822
        %v905 = vpack.c.bf16 %v848, %v845
        %v906 = vpack.c.bf16 %v871, %v868
        %v907 = vpack.c.bf16 %v894, %v891
        %v908 = vld [vmem:[%s387] sm:$0xff]
        %v909 = vld [vmem:[%s387 + $0x8] sm:$0xff]
        %v910 = vld [vmem:[%s387 + $0x10] sm:$0xff]
        %v911 = vld [vmem:[%s387 + $0x18] sm:$0xff]
        %v912 = vld [vmem:[%s387 + $0x20] sm:$0xff]
        %v913 = vld [vmem:[%s387 + $0x28] sm:$0xff]
        %v914 = vld [vmem:[%s387 + $0x30] sm:$0xff]
        %v915 = vld [vmem:[%s387 + $0x38] sm:$0xff]
        %v916 = vld [vmem:[%s387 + $0x40] sm:$0xff]
        %v917 = vld [vmem:[%s387 + $0x48] sm:$0xff]
        %v918 = vld [vmem:[%s387 + $0x50] sm:$0xff]
        %v919 = vld [vmem:[%s387 + $0x58] sm:$0xff]
        %v920 = vld [vmem:[%s387 + $0x60] sm:$0xff]
        %v921 = vld [vmem:[%s387 + $0x68] sm:$0xff]
        %v922 = vld [vmem:[%s387 + $0x70] sm:$0xff]
        %v923 = vld [vmem:[%s387 + $0x78] sm:$0xff]
        %v924 = vld [vmem:[%s387 + $0x80] sm:$0xff]
        %v925 = vld [vmem:[%s387 + $0x88] sm:$0xff]
        %v926 = vld [vmem:[%s387 + $0x90] sm:$0xff]
        %v927 = vld [vmem:[%s387 + $0x98] sm:$0xff]
        %v928 = vld [vmem:[%s387 + $0xa0] sm:$0xff]
        %v929 = vld [vmem:[%s387 + $0xa8] sm:$0xff]
        %v930 = vld [vmem:[%s387 + $0xb0] sm:$0xff]
        %v931 = vld [vmem:[%s387 + $0xb8] sm:$0xff]
        %v932 = vld [vmem:[%s387 + $0xc0] sm:$0xff]
        %v933 = vld [vmem:[%s387 + $0xc8] sm:$0xff]
        %v934 = vld [vmem:[%s387 + $0xd0] sm:$0xff]
        %v935 = vld [vmem:[%s387 + $0xd8] sm:$0xff]
        %v936 = vld [vmem:[%s387 + $0xe0] sm:$0xff]
        %v937 = vld [vmem:[%s387 + $0xe8] sm:$0xff]
        %v938 = vld [vmem:[%s387 + $0xf0] sm:$0xff]
        %v939 = vld [vmem:[%s387 + $0xf8] sm:$0xff]
        %v940 = vld [vmem:[%s387 + $0x100] sm:$0xff]
        %v941 = vld [vmem:[%s387 + $0x108] sm:$0xff]
        %v942 = vld [vmem:[%s387 + $0x110] sm:$0xff]
        %v943 = vld [vmem:[%s387 + $0x118] sm:$0xff]
        %v944 = vld [vmem:[%s387 + $0x120] sm:$0xff]
        %v945 = vld [vmem:[%s387 + $0x128] sm:$0xff]
        %v946 = vld [vmem:[%s387 + $0x130] sm:$0xff]
        %v947 = vld [vmem:[%s387 + $0x138] sm:$0xff]
        %v948 = vld [vmem:[%s387 + $0x140] sm:$0xff]
        %v949 = vld [vmem:[%s387 + $0x148] sm:$0xff]
        %v950 = vld [vmem:[%s387 + $0x150] sm:$0xff]
        %v951 = vld [vmem:[%s387 + $0x158] sm:$0xff]
        %v952 = vld [vmem:[%s387 + $0x160] sm:$0xff]
        %v953 = vld [vmem:[%s387 + $0x168] sm:$0xff]
        %v954 = vld [vmem:[%s387 + $0x170] sm:$0xff]
        %v955 = vld [vmem:[%s387 + $0x178] sm:$0xff]
        %v956 = vld [vmem:[%s387 + $0x180] sm:$0xff]
        %v957 = vld [vmem:[%s387 + $0x188] sm:$0xff]
        %v958 = vld [vmem:[%s387 + $0x190] sm:$0xff]
        %v959 = vld [vmem:[%s387 + $0x198] sm:$0xff]
        %v960 = vld [vmem:[%s387 + $0x1a0] sm:$0xff]
        %v961 = vld [vmem:[%s387 + $0x1a8] sm:$0xff]
        %v962 = vld [vmem:[%s387 + $0x1b0] sm:$0xff]
        %v963 = vld [vmem:[%s387 + $0x1b8] sm:$0xff]
        %v964 = vld [vmem:[%s387 + $0x1c0] sm:$0xff]
        %v965 = vld [vmem:[%s387 + $0x1c8] sm:$0xff]
        %v966 = vld [vmem:[%s387 + $0x1d0] sm:$0xff]
        %v967 = vld [vmem:[%s387 + $0x1d8] sm:$0xff]
        %v968 = vld [vmem:[%s387 + $0x1e0] sm:$0xff]
        %v969 = vld [vmem:[%s387 + $0x1e8] sm:$0xff]
        %v970 = vld [vmem:[%s387 + $0x1f0] sm:$0xff]
        %v971 = vld [vmem:[%s387 + $0x1f8] sm:$0xff]
        %v972 = vld [vmem:[%s387 + $0x200] sm:$0xff]
        %v973 = vld [vmem:[%s387 + $0x208] sm:$0xff]
        %v974 = vld [vmem:[%s387 + $0x210] sm:$0xff]
        %v975 = vld [vmem:[%s387 + $0x218] sm:$0xff]
        %v976 = vld [vmem:[%s387 + $0x220] sm:$0xff]
        %v977 = vld [vmem:[%s387 + $0x228] sm:$0xff]
        %v978 = vld [vmem:[%s387 + $0x230] sm:$0xff]
        %v979 = vld [vmem:[%s387 + $0x238] sm:$0xff]
        %v980 = vld [vmem:[%s387 + $0x240] sm:$0xff]
        %v981 = vld [vmem:[%s387 + $0x248] sm:$0xff]
        %v982 = vld [vmem:[%s387 + $0x250] sm:$0xff]
        %v983 = vld [vmem:[%s387 + $0x258] sm:$0xff]
        %v984 = vld [vmem:[%s387 + $0x260] sm:$0xff]
        %v985 = vld [vmem:[%s387 + $0x268] sm:$0xff]
        %v986 = vld [vmem:[%s387 + $0x270] sm:$0xff]
        %v987 = vld [vmem:[%s387 + $0x278] sm:$0xff]
        %v988 = vld [vmem:[%s387 + $0x280] sm:$0xff]
        %v989 = vld [vmem:[%s387 + $0x288] sm:$0xff]
        %v990 = vld [vmem:[%s387 + $0x290] sm:$0xff]
        %v991 = vld [vmem:[%s387 + $0x298] sm:$0xff]
        %v992 = vld [vmem:[%s387 + $0x2a0] sm:$0xff]
        %v993 = vld [vmem:[%s387 + $0x2a8] sm:$0xff]
        %v994 = vld [vmem:[%s387 + $0x2b0] sm:$0xff]
        %v995 = vld [vmem:[%s387 + $0x2b8] sm:$0xff]
        %v996 = vld [vmem:[%s387 + $0x2c0] sm:$0xff]
        %v997 = vld [vmem:[%s387 + $0x2c8] sm:$0xff]
        %v998 = vld [vmem:[%s387 + $0x2d0] sm:$0xff]
        %v999 = vld [vmem:[%s387 + $0x2d8] sm:$0xff]
        %v1000 = vld [vmem:[%s387 + $0x2e0] sm:$0xff]
        %v1001 = vld [vmem:[%s387 + $0x2e8] sm:$0xff]
        %v1002 = vld [vmem:[%s387 + $0x2f0] sm:$0xff]
        %v1003 = vld [vmem:[%s387 + $0x2f8] sm:$0xff]
        %v1004 = vld [vmem:[%s387 + $0x300] sm:$0xff]
        %v1005 = vld [vmem:[%s387 + $0x308] sm:$0xff]
        %v1006 = vld [vmem:[%s387 + $0x310] sm:$0xff]
        %v1007 = vld [vmem:[%s387 + $0x318] sm:$0xff]
        %v1008 = vld [vmem:[%s387 + $0x320] sm:$0xff]
        %v1009 = vld [vmem:[%s387 + $0x328] sm:$0xff]
        %v1010 = vld [vmem:[%s387 + $0x330] sm:$0xff]
        %v1011 = vld [vmem:[%s387 + $0x338] sm:$0xff]
        %v1012 = vld [vmem:[%s387 + $0x340] sm:$0xff]
        %v1013 = vld [vmem:[%s387 + $0x348] sm:$0xff]
        %v1014 = vld [vmem:[%s387 + $0x350] sm:$0xff]
        %v1015 = vld [vmem:[%s387 + $0x358] sm:$0xff]
        %v1016 = vld [vmem:[%s387 + $0x360] sm:$0xff]
        %v1017 = vld [vmem:[%s387 + $0x368] sm:$0xff]
        %v1018 = vld [vmem:[%s387 + $0x370] sm:$0xff]
        %v1019 = vld [vmem:[%s387 + $0x378] sm:$0xff]
        %v1020 = vld [vmem:[%s387 + $0x380] sm:$0xff]
        %v1021 = vld [vmem:[%s387 + $0x388] sm:$0xff]
        %v1022 = vld [vmem:[%s387 + $0x390] sm:$0xff]
        %v1023 = vld [vmem:[%s387 + $0x398] sm:$0xff]
        %v1024 = vld [vmem:[%s387 + $0x3a0] sm:$0xff]
        %v1025 = vld [vmem:[%s387 + $0x3a8] sm:$0xff]
        %v1026 = vld [vmem:[%s387 + $0x3b0] sm:$0xff]
        %v1027 = vld [vmem:[%s387 + $0x3b8] sm:$0xff]
        %v1028 = vld [vmem:[%s387 + $0x3c0] sm:$0xff]
        %v1029 = vld [vmem:[%s387 + $0x3c8] sm:$0xff]
        %v1030 = vld [vmem:[%s387 + $0x3d0] sm:$0xff]
        %v1031 = vld [vmem:[%s387 + $0x3d8] sm:$0xff]
        %v1032 = vld [vmem:[%s387 + $0x3e0] sm:$0xff]
        %v1033 = vld [vmem:[%s387 + $0x3e8] sm:$0xff]
        %v1034 = vld [vmem:[%s387 + $0x3f0] sm:$0xff]
        %v1035 = vld [vmem:[%s387 + $0x3f8] sm:$0xff]
        %v1164 = vunpack.c.l.b16 %v908
        %v1165 = vunpack.c.h.b16 %v908
        %v1166 = vunpack.c.l.b16 %v909
        %v1167 = vunpack.c.h.b16 %v909
        %v1168 = vunpack.c.l.b16 %v910
        %v1169 = vunpack.c.h.b16 %v910
        %v1170 = vunpack.c.l.b16 %v911
        %v1171 = vunpack.c.h.b16 %v911
        %v1172 = vunpack.c.l.b16 %v912
        %v1173 = vunpack.c.h.b16 %v912
        %v1174 = vunpack.c.l.b16 %v913
        %v1175 = vunpack.c.h.b16 %v913
        %v1176 = vunpack.c.l.b16 %v914
        %v1177 = vunpack.c.h.b16 %v914
        %v1178 = vunpack.c.l.b16 %v915
        %v1179 = vunpack.c.h.b16 %v915
        %v1180 = vunpack.c.l.b16 %v916
        %v1181 = vunpack.c.h.b16 %v916
        %v1182 = vunpack.c.l.b16 %v917
        %v1183 = vunpack.c.h.b16 %v917
        %v1184 = vunpack.c.l.b16 %v918
        %v1185 = vunpack.c.h.b16 %v918
        %v1186 = vunpack.c.l.b16 %v919
        %v1187 = vunpack.c.h.b16 %v919
        %v1188 = vunpack.c.l.b16 %v920
        %v1189 = vunpack.c.h.b16 %v920
        %v1190 = vunpack.c.l.b16 %v921
        %v1191 = vunpack.c.h.b16 %v921
        %v1192 = vunpack.c.l.b16 %v922
        %v1193 = vunpack.c.h.b16 %v922
        %v1194 = vunpack.c.l.b16 %v923
        %v1195 = vunpack.c.h.b16 %v923
        %v1196 = vunpack.c.l.b16 %v924
        %v1197 = vunpack.c.h.b16 %v924
        %v1198 = vunpack.c.l.b16 %v925
        %v1199 = vunpack.c.h.b16 %v925
        %v1200 = vunpack.c.l.b16 %v926
        %v1201 = vunpack.c.h.b16 %v926
        %v1202 = vunpack.c.l.b16 %v927
        %v1203 = vunpack.c.h.b16 %v927
        %v1204 = vunpack.c.l.b16 %v928
        %v1205 = vunpack.c.h.b16 %v928
        %v1206 = vunpack.c.l.b16 %v929
        %v1207 = vunpack.c.h.b16 %v929
        %v1208 = vunpack.c.l.b16 %v930
        %v1209 = vunpack.c.h.b16 %v930
        %v1210 = vunpack.c.l.b16 %v931
        %v1211 = vunpack.c.h.b16 %v931
        %v1212 = vunpack.c.l.b16 %v932
        %v1213 = vunpack.c.h.b16 %v932
        %v1214 = vunpack.c.l.b16 %v933
        %v1215 = vunpack.c.h.b16 %v933
        %v1216 = vunpack.c.l.b16 %v934
        %v1217 = vunpack.c.h.b16 %v934
        %v1218 = vunpack.c.l.b16 %v935
        %v1219 = vunpack.c.h.b16 %v935
        %v1220 = vunpack.c.l.b16 %v936
        %v1221 = vunpack.c.h.b16 %v936
        %v1222 = vunpack.c.l.b16 %v937
        %v1223 = vunpack.c.h.b16 %v937
        %v1224 = vunpack.c.l.b16 %v938
        %v1225 = vunpack.c.h.b16 %v938
        %v1226 = vunpack.c.l.b16 %v939
        %v1227 = vunpack.c.h.b16 %v939
        %v1228 = vunpack.c.l.b16 %v940
        %v1229 = vunpack.c.h.b16 %v940
        %v1230 = vunpack.c.l.b16 %v941
        %v1231 = vunpack.c.h.b16 %v941
        %v1232 = vunpack.c.l.b16 %v942
        %v1233 = vunpack.c.h.b16 %v942
        %v1234 = vunpack.c.l.b16 %v943
        %v1235 = vunpack.c.h.b16 %v943
        %v1236 = vunpack.c.l.b16 %v944
        %v1237 = vunpack.c.h.b16 %v944
        %v1238 = vunpack.c.l.b16 %v945
        %v1239 = vunpack.c.h.b16 %v945
        %v1240 = vunpack.c.l.b16 %v946
        %v1241 = vunpack.c.h.b16 %v946
        %v1242 = vunpack.c.l.b16 %v947
        %v1243 = vunpack.c.h.b16 %v947
        %v1244 = vunpack.c.l.b16 %v948
        %v1245 = vunpack.c.h.b16 %v948
        %v1246 = vunpack.c.l.b16 %v949
        %v1247 = vunpack.c.h.b16 %v949
        %v1248 = vunpack.c.l.b16 %v950
        %v1249 = vunpack.c.h.b16 %v950
        %v1250 = vunpack.c.l.b16 %v951
        %v1251 = vunpack.c.h.b16 %v951
        %v1252 = vunpack.c.l.b16 %v952
        %v1253 = vunpack.c.h.b16 %v952
        %v1254 = vunpack.c.l.b16 %v953
        %v1255 = vunpack.c.h.b16 %v953
        %v1256 = vunpack.c.l.b16 %v954
        %v1257 = vunpack.c.h.b16 %v954
        %v1258 = vunpack.c.l.b16 %v955
        %v1259 = vunpack.c.h.b16 %v955
        %v1260 = vunpack.c.l.b16 %v956
        %v1261 = vunpack.c.h.b16 %v956
        %v1262 = vunpack.c.l.b16 %v957
        %v1263 = vunpack.c.h.b16 %v957
        %v1264 = vunpack.c.l.b16 %v958
        %v1265 = vunpack.c.h.b16 %v958
        %v1266 = vunpack.c.l.b16 %v959
        %v1267 = vunpack.c.h.b16 %v959
        %v1268 = vunpack.c.l.b16 %v960
        %v1269 = vunpack.c.h.b16 %v960
        %v1270 = vunpack.c.l.b16 %v961
        %v1271 = vunpack.c.h.b16 %v961
        %v1272 = vunpack.c.l.b16 %v962
        %v1273 = vunpack.c.h.b16 %v962
        %v1274 = vunpack.c.l.b16 %v963
        %v1275 = vunpack.c.h.b16 %v963
        %v1276 = vunpack.c.l.b16 %v964
        %v1277 = vunpack.c.h.b16 %v964
        %v1278 = vunpack.c.l.b16 %v965
        %v1279 = vunpack.c.h.b16 %v965
        %v1280 = vunpack.c.l.b16 %v966
        %v1281 = vunpack.c.h.b16 %v966
        %v1282 = vunpack.c.l.b16 %v967
        %v1283 = vunpack.c.h.b16 %v967
        %v1284 = vunpack.c.l.b16 %v968
        %v1285 = vunpack.c.h.b16 %v968
        %v1286 = vunpack.c.l.b16 %v969
        %v1287 = vunpack.c.h.b16 %v969
        %v1288 = vunpack.c.l.b16 %v970
        %v1289 = vunpack.c.h.b16 %v970
        %v1290 = vunpack.c.l.b16 %v971
        %v1291 = vunpack.c.h.b16 %v971
        %v1292 = vunpack.c.l.b16 %v972
        %v1293 = vunpack.c.h.b16 %v972
        %v1294 = vunpack.c.l.b16 %v973
        %v1295 = vunpack.c.h.b16 %v973
        %v1296 = vunpack.c.l.b16 %v974
        %v1297 = vunpack.c.h.b16 %v974
        %v1298 = vunpack.c.l.b16 %v975
        %v1299 = vunpack.c.h.b16 %v975
        %v1300 = vunpack.c.l.b16 %v976
        %v1301 = vunpack.c.h.b16 %v976
        %v1302 = vunpack.c.l.b16 %v977
        %v1303 = vunpack.c.h.b16 %v977
        %v1304 = vunpack.c.l.b16 %v978
        %v1305 = vunpack.c.h.b16 %v978
        %v1306 = vunpack.c.l.b16 %v979
        %v1307 = vunpack.c.h.b16 %v979
        %v1308 = vunpack.c.l.b16 %v980
        %v1309 = vunpack.c.h.b16 %v980
        %v1310 = vunpack.c.l.b16 %v981
        %v1311 = vunpack.c.h.b16 %v981
        %v1312 = vunpack.c.l.b16 %v982
        %v1313 = vunpack.c.h.b16 %v982
        %v1314 = vunpack.c.l.b16 %v983
        %v1315 = vunpack.c.h.b16 %v983
        %v1316 = vunpack.c.l.b16 %v984
        %v1317 = vunpack.c.h.b16 %v984
        %v1318 = vunpack.c.l.b16 %v985
        %v1319 = vunpack.c.h.b16 %v985
        %v1320 = vunpack.c.l.b16 %v986
        %v1321 = vunpack.c.h.b16 %v986
        %v1322 = vunpack.c.l.b16 %v987
        %v1323 = vunpack.c.h.b16 %v987
        %v1324 = vunpack.c.l.b16 %v988
        %v1325 = vunpack.c.h.b16 %v988
        %v1326 = vunpack.c.l.b16 %v989
        %v1327 = vunpack.c.h.b16 %v989
        %v1328 = vunpack.c.l.b16 %v990
        %v1329 = vunpack.c.h.b16 %v990
        %v1330 = vunpack.c.l.b16 %v991
        %v1331 = vunpack.c.h.b16 %v991
        %v1332 = vunpack.c.l.b16 %v992
        %v1333 = vunpack.c.h.b16 %v992
        %v1334 = vunpack.c.l.b16 %v993
        %v1335 = vunpack.c.h.b16 %v993
        %v1336 = vunpack.c.l.b16 %v994
        %v1337 = vunpack.c.h.b16 %v994
        %v1338 = vunpack.c.l.b16 %v995
        %v1339 = vunpack.c.h.b16 %v995
        %v1340 = vunpack.c.l.b16 %v996
        %v1341 = vunpack.c.h.b16 %v996
        %v1342 = vunpack.c.l.b16 %v997
        %v1343 = vunpack.c.h.b16 %v997
        %v1344 = vunpack.c.l.b16 %v998
        %v1345 = vunpack.c.h.b16 %v998
        %v1346 = vunpack.c.l.b16 %v999
        %v1347 = vunpack.c.h.b16 %v999
        %v1348 = vunpack.c.l.b16 %v1000
        %v1349 = vunpack.c.h.b16 %v1000
        %v1350 = vunpack.c.l.b16 %v1001
        %v1351 = vunpack.c.h.b16 %v1001
        %v1352 = vunpack.c.l.b16 %v1002
        %v1353 = vunpack.c.h.b16 %v1002
        %v1354 = vunpack.c.l.b16 %v1003
        %v1355 = vunpack.c.h.b16 %v1003
        %v1356 = vunpack.c.l.b16 %v1004
        %v1357 = vunpack.c.h.b16 %v1004
        %v1358 = vunpack.c.l.b16 %v1005
        %v1359 = vunpack.c.h.b16 %v1005
        %v1360 = vunpack.c.l.b16 %v1006
        %v1361 = vunpack.c.h.b16 %v1006
        %v1362 = vunpack.c.l.b16 %v1007
        %v1363 = vunpack.c.h.b16 %v1007
        %v1364 = vunpack.c.l.b16 %v1008
        %v1365 = vunpack.c.h.b16 %v1008
        %v1366 = vunpack.c.l.b16 %v1009
        %v1367 = vunpack.c.h.b16 %v1009
        %v1368 = vunpack.c.l.b16 %v1010
        %v1369 = vunpack.c.h.b16 %v1010
        %v1370 = vunpack.c.l.b16 %v1011
        %v1371 = vunpack.c.h.b16 %v1011
        %v1372 = vunpack.c.l.b16 %v1012
        %v1373 = vunpack.c.h.b16 %v1012
        %v1374 = vunpack.c.l.b16 %v1013
        %v1375 = vunpack.c.h.b16 %v1013
        %v1376 = vunpack.c.l.b16 %v1014
        %v1377 = vunpack.c.h.b16 %v1014
        %v1378 = vunpack.c.l.b16 %v1015
        %v1379 = vunpack.c.h.b16 %v1015
        %v1380 = vunpack.c.l.b16 %v1016
        %v1381 = vunpack.c.h.b16 %v1016
        %v1382 = vunpack.c.l.b16 %v1017
        %v1383 = vunpack.c.h.b16 %v1017
        %v1384 = vunpack.c.l.b16 %v1018
        %v1385 = vunpack.c.h.b16 %v1018
        %v1386 = vunpack.c.l.b16 %v1019
        %v1387 = vunpack.c.h.b16 %v1019
        %v1388 = vunpack.c.l.b16 %v1020
        %v1389 = vunpack.c.h.b16 %v1020
        %v1390 = vunpack.c.l.b16 %v1021
        %v1391 = vunpack.c.h.b16 %v1021
        %v1392 = vunpack.c.l.b16 %v1022
        %v1393 = vunpack.c.h.b16 %v1022
        %v1394 = vunpack.c.l.b16 %v1023
        %v1395 = vunpack.c.h.b16 %v1023
        %v1396 = vunpack.c.l.b16 %v1024
        %v1397 = vunpack.c.h.b16 %v1024
        %v1398 = vunpack.c.l.b16 %v1025
        %v1399 = vunpack.c.h.b16 %v1025
        %v1400 = vunpack.c.l.b16 %v1026
        %v1401 = vunpack.c.h.b16 %v1026
        %v1402 = vunpack.c.l.b16 %v1027
        %v1403 = vunpack.c.h.b16 %v1027
        %v1404 = vunpack.c.l.b16 %v1028
        %v1405 = vunpack.c.h.b16 %v1028
        %v1406 = vunpack.c.l.b16 %v1029
        %v1407 = vunpack.c.h.b16 %v1029
        %v1408 = vunpack.c.l.b16 %v1030
        %v1409 = vunpack.c.h.b16 %v1030
        %v1410 = vunpack.c.l.b16 %v1031
        %v1411 = vunpack.c.h.b16 %v1031
        %v1412 = vunpack.c.l.b16 %v1032
        %v1413 = vunpack.c.h.b16 %v1032
        %v1414 = vunpack.c.l.b16 %v1033
        %v1415 = vunpack.c.h.b16 %v1033
        %v1416 = vunpack.c.l.b16 %v1034
        %v1417 = vunpack.c.h.b16 %v1034
        %v1418 = vunpack.c.l.b16 %v1035
        %v1419 = vunpack.c.h.b16 %v1035
        %v1420 = vpack.c.b16 %v1168, %v1164
        %v1421 = vpack.c.b16 %v1169, %v1165
        %v1422 = vpack.c.b16 %v1170, %v1166
        %v1423 = vpack.c.b16 %v1171, %v1167
        %v1424 = vpack.c.b16 %v1176, %v1172
        %v1425 = vpack.c.b16 %v1177, %v1173
        %v1426 = vpack.c.b16 %v1178, %v1174
        %v1427 = vpack.c.b16 %v1179, %v1175
        %v1428 = vpack.c.b16 %v1184, %v1180
        %v1429 = vpack.c.b16 %v1185, %v1181
        %v1430 = vpack.c.b16 %v1186, %v1182
        %v1431 = vpack.c.b16 %v1187, %v1183
        %v1432 = vpack.c.b16 %v1192, %v1188
        %v1433 = vpack.c.b16 %v1193, %v1189
        %v1434 = vpack.c.b16 %v1194, %v1190
        %v1435 = vpack.c.b16 %v1195, %v1191
        %v1436 = vpack.c.b16 %v1200, %v1196
        %v1437 = vpack.c.b16 %v1201, %v1197
        %v1438 = vpack.c.b16 %v1202, %v1198
        %v1439 = vpack.c.b16 %v1203, %v1199
        %v1440 = vpack.c.b16 %v1208, %v1204
        %v1441 = vpack.c.b16 %v1209, %v1205
        %v1442 = vpack.c.b16 %v1210, %v1206
        %v1443 = vpack.c.b16 %v1211, %v1207
        %v1444 = vpack.c.b16 %v1216, %v1212
        %v1445 = vpack.c.b16 %v1217, %v1213
        %v1446 = vpack.c.b16 %v1218, %v1214
        %v1447 = vpack.c.b16 %v1219, %v1215
        %v1448 = vpack.c.b16 %v1224, %v1220
        %v1449 = vpack.c.b16 %v1225, %v1221
        %v1450 = vpack.c.b16 %v1226, %v1222
        %v1451 = vpack.c.b16 %v1227, %v1223
        %v1452 = vpack.c.b16 %v1232, %v1228
        %v1453 = vpack.c.b16 %v1233, %v1229
        %v1454 = vpack.c.b16 %v1234, %v1230
        %v1455 = vpack.c.b16 %v1235, %v1231
        %v1456 = vpack.c.b16 %v1240, %v1236
        %v1457 = vpack.c.b16 %v1241, %v1237
        %v1458 = vpack.c.b16 %v1242, %v1238
        %v1459 = vpack.c.b16 %v1243, %v1239
        %v1460 = vpack.c.b16 %v1248, %v1244
        %v1461 = vpack.c.b16 %v1249, %v1245
        %v1462 = vpack.c.b16 %v1250, %v1246
        %v1463 = vpack.c.b16 %v1251, %v1247
        %v1464 = vpack.c.b16 %v1256, %v1252
        %v1465 = vpack.c.b16 %v1257, %v1253
        %v1466 = vpack.c.b16 %v1258, %v1254
        %v1467 = vpack.c.b16 %v1259, %v1255
        %v1468 = vpack.c.b16 %v1264, %v1260
        %v1469 = vpack.c.b16 %v1265, %v1261
        %v1470 = vpack.c.b16 %v1266, %v1262
        %v1471 = vpack.c.b16 %v1267, %v1263
        %v1472 = vpack.c.b16 %v1272, %v1268
        %v1473 = vpack.c.b16 %v1273, %v1269
        %v1474 = vpack.c.b16 %v1274, %v1270
        %v1475 = vpack.c.b16 %v1275, %v1271
        %v1476 = vpack.c.b16 %v1280, %v1276
        %v1477 = vpack.c.b16 %v1281, %v1277
        %v1478 = vpack.c.b16 %v1282, %v1278
        %v1479 = vpack.c.b16 %v1283, %v1279
        %v1480 = vpack.c.b16 %v1288, %v1284
        %v1481 = vpack.c.b16 %v1289, %v1285
        %v1482 = vpack.c.b16 %v1290, %v1286
        %v1483 = vpack.c.b16 %v1291, %v1287
        %v1484 = vpack.c.b16 %v1296, %v1292
        %v1485 = vpack.c.b16 %v1297, %v1293
        %v1486 = vpack.c.b16 %v1298, %v1294
        %v1487 = vpack.c.b16 %v1299, %v1295
        %v1488 = vpack.c.b16 %v1304, %v1300
        %v1489 = vpack.c.b16 %v1305, %v1301
        %v1490 = vpack.c.b16 %v1306, %v1302
        %v1491 = vpack.c.b16 %v1307, %v1303
        %v1492 = vpack.c.b16 %v1312, %v1308
        %v1493 = vpack.c.b16 %v1313, %v1309
        %v1494 = vpack.c.b16 %v1314, %v1310
        %v1495 = vpack.c.b16 %v1315, %v1311
        %v1496 = vpack.c.b16 %v1320, %v1316
        %v1497 = vpack.c.b16 %v1321, %v1317
        %v1498 = vpack.c.b16 %v1322, %v1318
        %v1499 = vpack.c.b16 %v1323, %v1319
        %v1500 = vpack.c.b16 %v1328, %v1324
        %v1501 = vpack.c.b16 %v1329, %v1325
        %v1502 = vpack.c.b16 %v1330, %v1326
        %v1503 = vpack.c.b16 %v1331, %v1327
        %v1504 = vpack.c.b16 %v1336, %v1332
        %v1505 = vpack.c.b16 %v1337, %v1333
        %v1506 = vpack.c.b16 %v1338, %v1334
        %v1507 = vpack.c.b16 %v1339, %v1335
        %v1508 = vpack.c.b16 %v1344, %v1340
        %v1509 = vpack.c.b16 %v1345, %v1341
        %v1510 = vpack.c.b16 %v1346, %v1342
        %v1511 = vpack.c.b16 %v1347, %v1343
        %v1512 = vpack.c.b16 %v1352, %v1348
        %v1513 = vpack.c.b16 %v1353, %v1349
        %v1514 = vpack.c.b16 %v1354, %v1350
        %v1515 = vpack.c.b16 %v1355, %v1351
        %v1516 = vpack.c.b16 %v1360, %v1356
        %v1517 = vpack.c.b16 %v1361, %v1357
        %v1518 = vpack.c.b16 %v1362, %v1358
        %v1519 = vpack.c.b16 %v1363, %v1359
        %v1520 = vpack.c.b16 %v1368, %v1364
        %v1521 = vpack.c.b16 %v1369, %v1365
        %v1522 = vpack.c.b16 %v1370, %v1366
        %v1523 = vpack.c.b16 %v1371, %v1367
        %v1524 = vpack.c.b16 %v1376, %v1372
        %v1525 = vpack.c.b16 %v1377, %v1373
        %v1526 = vpack.c.b16 %v1378, %v1374
        %v1527 = vpack.c.b16 %v1379, %v1375
        %v1528 = vpack.c.b16 %v1384, %v1380
        %v1529 = vpack.c.b16 %v1385, %v1381
        %v1530 = vpack.c.b16 %v1386, %v1382
        %v1531 = vpack.c.b16 %v1387, %v1383
        %v1532 = vpack.c.b16 %v1392, %v1388
        %v1533 = vpack.c.b16 %v1393, %v1389
        %v1534 = vpack.c.b16 %v1394, %v1390
        %v1535 = vpack.c.b16 %v1395, %v1391
        %v1536 = vpack.c.b16 %v1400, %v1396
        %v1537 = vpack.c.b16 %v1401, %v1397
        %v1538 = vpack.c.b16 %v1402, %v1398
        %v1539 = vpack.c.b16 %v1403, %v1399
        %v1540 = vpack.c.b16 %v1408, %v1404
        %v1541 = vpack.c.b16 %v1409, %v1405
        %v1542 = vpack.c.b16 %v1410, %v1406
        %v1543 = vpack.c.b16 %v1411, %v1407
        %v1544 = vpack.c.b16 %v1416, %v1412
        %v1545 = vpack.c.b16 %v1417, %v1413
        %v1546 = vpack.c.b16 %v1418, %v1414
        %v1547 = vpack.c.b16 %v1419, %v1415
        %1676 = vmatpush.bf16.msra.mxu0 %v1448
        %1677 = vmatpush.bf16.msra.mxu0 %v1444
        %1678 = vmatpush.bf16.msra.mxu0 %v1440
        %1679 = vmatpush.bf16.msra.mxu0 %v1436
        %1680 = vmatpush.bf16.msra.mxu0 %v1432
        %1681 = vmatpush.bf16.msra.mxu0 %v1428
        %1682 = vmatpush.bf16.msra.mxu0 %v1424
        %1683 = vmatpush.bf16.msra.mxu0 %v1420
        %1684 = vmatmul.bf16.gmra.mxu0 %v904
        %v1685 = vpop.f32.mrf.mxu0
        %v1686 = vadd.f32 0.0, %v1685
        %v1687 = vpop.f32.mrf.mxu0
        %v1688 = vadd.f32 0.0, %v1687
        %1689 = vdwg.mxu0
        %1690 = vmatpush.bf16.msra.mxu0 %v1480
        %1691 = vmatpush.bf16.msra.mxu0 %v1476
        %1692 = vmatpush.bf16.msra.mxu0 %v1472
        %1693 = vmatpush.bf16.msra.mxu0 %v1468
        %1694 = vmatpush.bf16.msra.mxu0 %v1464
        %1695 = vmatpush.bf16.msra.mxu0 %v1460
        %1696 = vmatpush.bf16.msra.mxu0 %v1456
        %1697 = vmatpush.bf16.msra.mxu0 %v1452
        %1698 = vmatmul.bf16.gmra.mxu0 %v905
        %v1699 = vpop.f32.mrf.mxu0
        %v1700 = vadd.f32 %v1686, %v1699
        %v1701 = vpop.f32.mrf.mxu0
        %v1702 = vadd.f32 %v1688, %v1701
        %1703 = vdwg.mxu0
        %1704 = vmatpush.bf16.msra.mxu0 %v1512
        %1705 = vmatpush.bf16.msra.mxu0 %v1508
        %1706 = vmatpush.bf16.msra.mxu0 %v1504
        %1707 = vmatpush.bf16.msra.mxu0 %v1500
        %1708 = vmatpush.bf16.msra.mxu0 %v1496
        %1709 = vmatpush.bf16.msra.mxu0 %v1492
        %1710 = vmatpush.bf16.msra.mxu0 %v1488
        %1711 = vmatpush.bf16.msra.mxu0 %v1484
        %1712 = vmatmul.bf16.gmra.mxu0 %v906
        %v1713 = vpop.f32.mrf.mxu0
        %v1714 = vadd.f32 %v1700, %v1713
        %v1715 = vpop.f32.mrf.mxu0
        %v1716 = vadd.f32 %v1702, %v1715
        %1717 = vdwg.mxu0
        %1718 = vmatpush.bf16.msra.mxu0 %v1544
        %1719 = vmatpush.bf16.msra.mxu0 %v1540
        %1720 = vmatpush.bf16.msra.mxu0 %v1536
        %1721 = vmatpush.bf16.msra.mxu0 %v1532
        %1722 = vmatpush.bf16.msra.mxu0 %v1528
        %1723 = vmatpush.bf16.msra.mxu0 %v1524
        %1724 = vmatpush.bf16.msra.mxu0 %v1520
        %1725 = vmatpush.bf16.msra.mxu0 %v1516
        %1726 = vmatmul.bf16.gmra.mxu0 %v907
        %v1727 = vpop.f32.mrf.mxu0
        %v1728 = vadd.f32 %v1714, %v1727
        %v1729 = vpop.f32.mrf.mxu0
        %v1730 = vadd.f32 %v1716, %v1729
        %1731 = vdwg.mxu0
        %1732 = vmatpush.bf16.msra.mxu0 %v1449
        %1733 = vmatpush.bf16.msra.mxu0 %v1445
        %1734 = vmatpush.bf16.msra.mxu0 %v1441
        %1735 = vmatpush.bf16.msra.mxu0 %v1437
        %1736 = vmatpush.bf16.msra.mxu0 %v1433
        %1737 = vmatpush.bf16.msra.mxu0 %v1429
        %1738 = vmatpush.bf16.msra.mxu0 %v1425
        %1739 = vmatpush.bf16.msra.mxu0 %v1421
        %1740 = vmatmul.bf16.gmra.mxu0 %v904
        %v1741 = vpop.f32.mrf.mxu0
        %v1742 = vadd.f32 0.0, %v1741
        %v1743 = vpop.f32.mrf.mxu0
        %v1744 = vadd.f32 0.0, %v1743
        %1745 = vdwg.mxu0
        %1746 = vmatpush.bf16.msra.mxu0 %v1481
        %1747 = vmatpush.bf16.msra.mxu0 %v1477
        %1748 = vmatpush.bf16.msra.mxu0 %v1473
        %1749 = vmatpush.bf16.msra.mxu0 %v1469
        %1750 = vmatpush.bf16.msra.mxu0 %v1465
        %1751 = vmatpush.bf16.msra.mxu0 %v1461
        %1752 = vmatpush.bf16.msra.mxu0 %v1457
        %1753 = vmatpush.bf16.msra.mxu0 %v1453
        %1754 = vmatmul.bf16.gmra.mxu0 %v905
        %v1755 = vpop.f32.mrf.mxu0
        %v1756 = vadd.f32 %v1742, %v1755
        %v1757 = vpop.f32.mrf.mxu0
        %v1758 = vadd.f32 %v1744, %v1757
        %1759 = vdwg.mxu0
        %1760 = vmatpush.bf16.msra.mxu0 %v1513
        %1761 = vmatpush.bf16.msra.mxu0 %v1509
        %1762 = vmatpush.bf16.msra.mxu0 %v1505
        %1763 = vmatpush.bf16.msra.mxu0 %v1501
        %1764 = vmatpush.bf16.msra.mxu0 %v1497
        %1765 = vmatpush.bf16.msra.mxu0 %v1493
        %1766 = vmatpush.bf16.msra.mxu0 %v1489
        %1767 = vmatpush.bf16.msra.mxu0 %v1485
        %1768 = vmatmul.bf16.gmra.mxu0 %v906
        %v1769 = vpop.f32.mrf.mxu0
        %v1770 = vadd.f32 %v1756, %v1769
        %v1771 = vpop.f32.mrf.mxu0
        %v1772 = vadd.f32 %v1758, %v1771
        %1773 = vdwg.mxu0
        %1774 = vmatpush.bf16.msra.mxu0 %v1545
        %1775 = vmatpush.bf16.msra.mxu0 %v1541
        %1776 = vmatpush.bf16.msra.mxu0 %v1537
        %1777 = vmatpush.bf16.msra.mxu0 %v1533
        %1778 = vmatpush.bf16.msra.mxu0 %v1529
        %1779 = vmatpush.bf16.msra.mxu0 %v1525
        %1780 = vmatpush.bf16.msra.mxu0 %v1521
        %1781 = vmatpush.bf16.msra.mxu0 %v1517
        %1782 = vmatmul.bf16.gmra.mxu0 %v907
        %v1783 = vpop.f32.mrf.mxu0
        %v1784 = vadd.f32 %v1770, %v1783
        %v1785 = vpop.f32.mrf.mxu0
        %v1786 = vadd.f32 %v1772, %v1785
        %1787 = vdwg.mxu0
        %1788 = vmatpush.bf16.msra.mxu0 %v1450
        %1789 = vmatpush.bf16.msra.mxu0 %v1446
        %1790 = vmatpush.bf16.msra.mxu0 %v1442
        %1791 = vmatpush.bf16.msra.mxu0 %v1438
        %1792 = vmatpush.bf16.msra.mxu0 %v1434
        %1793 = vmatpush.bf16.msra.mxu0 %v1430
        %1794 = vmatpush.bf16.msra.mxu0 %v1426
        %1795 = vmatpush.bf16.msra.mxu0 %v1422
        %1796 = vmatmul.bf16.gmra.mxu0 %v904
        %v1797 = vpop.f32.mrf.mxu0
        %v1798 = vadd.f32 0.0, %v1797
        %v1799 = vpop.f32.mrf.mxu0
        %v1800 = vadd.f32 0.0, %v1799
        %1801 = vdwg.mxu0
        %1802 = vmatpush.bf16.msra.mxu0 %v1482
        %1803 = vmatpush.bf16.msra.mxu0 %v1478
        %1804 = vmatpush.bf16.msra.mxu0 %v1474
        %1805 = vmatpush.bf16.msra.mxu0 %v1470
        %1806 = vmatpush.bf16.msra.mxu0 %v1466
        %1807 = vmatpush.bf16.msra.mxu0 %v1462
        %1808 = vmatpush.bf16.msra.mxu0 %v1458
        %1809 = vmatpush.bf16.msra.mxu0 %v1454
        %1810 = vmatmul.bf16.gmra.mxu0 %v905
        %v1811 = vpop.f32.mrf.mxu0
        %v1812 = vadd.f32 %v1798, %v1811
        %v1813 = vpop.f32.mrf.mxu0
        %v1814 = vadd.f32 %v1800, %v1813
        %1815 = vdwg.mxu0
        %1816 = vmatpush.bf16.msra.mxu0 %v1514
        %1817 = vmatpush.bf16.msra.mxu0 %v1510
        %1818 = vmatpush.bf16.msra.mxu0 %v1506
        %1819 = vmatpush.bf16.msra.mxu0 %v1502
        %1820 = vmatpush.bf16.msra.mxu0 %v1498
        %1821 = vmatpush.bf16.msra.mxu0 %v1494
        %1822 = vmatpush.bf16.msra.mxu0 %v1490
        %1823 = vmatpush.bf16.msra.mxu0 %v1486
        %1824 = vmatmul.bf16.gmra.mxu0 %v906
        %v1825 = vpop.f32.mrf.mxu0
        %v1826 = vadd.f32 %v1812, %v1825
        %v1827 = vpop.f32.mrf.mxu0
        %v1828 = vadd.f32 %v1814, %v1827
        %1829 = vdwg.mxu0
        %1830 = vmatpush.bf16.msra.mxu0 %v1546
        %1831 = vmatpush.bf16.msra.mxu0 %v1542
        %1832 = vmatpush.bf16.msra.mxu0 %v1538
        %1833 = vmatpush.bf16.msra.mxu0 %v1534
        %1834 = vmatpush.bf16.msra.mxu0 %v1530
        %1835 = vmatpush.bf16.msra.mxu0 %v1526
        %1836 = vmatpush.bf16.msra.mxu0 %v1522
        %1837 = vmatpush.bf16.msra.mxu0 %v1518
        %1838 = vmatmul.bf16.gmra.mxu0 %v907
        %v1839 = vpop.f32.mrf.mxu0
        %v1840 = vadd.f32 %v1826, %v1839
        %v1841 = vpop.f32.mrf.mxu0
        %v1842 = vadd.f32 %v1828, %v1841
        %1843 = vdwg.mxu0
        %1844 = vmatpush.bf16.msra.mxu0 %v1451
        %1845 = vmatpush.bf16.msra.mxu0 %v1447
        %1846 = vmatpush.bf16.msra.mxu0 %v1443
        %1847 = vmatpush.bf16.msra.mxu0 %v1439
        %1848 = vmatpush.bf16.msra.mxu0 %v1435
        %1849 = vmatpush.bf16.msra.mxu0 %v1431
        %1850 = vmatpush.bf16.msra.mxu0 %v1427
        %1851 = vmatpush.bf16.msra.mxu0 %v1423
        %1852 = vmatmul.bf16.gmra.mxu0 %v904
        %v1853 = vpop.f32.mrf.mxu0
        %v1854 = vadd.f32 0.0, %v1853
        %v1855 = vpop.f32.mrf.mxu0
        %v1856 = vadd.f32 0.0, %v1855
        %1857 = vdwg.mxu0
        %1858 = vmatpush.bf16.msra.mxu0 %v1483
        %1859 = vmatpush.bf16.msra.mxu0 %v1479
        %1860 = vmatpush.bf16.msra.mxu0 %v1475
        %1861 = vmatpush.bf16.msra.mxu0 %v1471
        %1862 = vmatpush.bf16.msra.mxu0 %v1467
        %1863 = vmatpush.bf16.msra.mxu0 %v1463
        %1864 = vmatpush.bf16.msra.mxu0 %v1459
        %1865 = vmatpush.bf16.msra.mxu0 %v1455
        %1866 = vmatmul.bf16.gmra.mxu0 %v905
        %v1867 = vpop.f32.mrf.mxu0
        %v1868 = vadd.f32 %v1854, %v1867
        %v1869 = vpop.f32.mrf.mxu0
        %v1870 = vadd.f32 %v1856, %v1869
        %1871 = vdwg.mxu0
        %1872 = vmatpush.bf16.msra.mxu0 %v1515
        %1873 = vmatpush.bf16.msra.mxu0 %v1511
        %1874 = vmatpush.bf16.msra.mxu0 %v1507
        %1875 = vmatpush.bf16.msra.mxu0 %v1503
        %1876 = vmatpush.bf16.msra.mxu0 %v1499
        %1877 = vmatpush.bf16.msra.mxu0 %v1495
        %1878 = vmatpush.bf16.msra.mxu0 %v1491
        %1879 = vmatpush.bf16.msra.mxu0 %v1487
        %1880 = vmatmul.bf16.gmra.mxu0 %v906
        %v1881 = vpop.f32.mrf.mxu0
        %v1882 = vadd.f32 %v1868, %v1881
        %v1883 = vpop.f32.mrf.mxu0
        %v1884 = vadd.f32 %v1870, %v1883
        %1885 = vdwg.mxu0
        %1886 = vmatpush.bf16.msra.mxu0 %v1547
        %1887 = vmatpush.bf16.msra.mxu0 %v1543
        %1888 = vmatpush.bf16.msra.mxu0 %v1539
        %1889 = vmatpush.bf16.msra.mxu0 %v1535
        %1890 = vmatpush.bf16.msra.mxu0 %v1531
        %1891 = vmatpush.bf16.msra.mxu0 %v1527
        %1892 = vmatpush.bf16.msra.mxu0 %v1523
        %1893 = vmatpush.bf16.msra.mxu0 %v1519
        %1894 = vmatmul.bf16.gmra.mxu0 %v907
        %v1895 = vpop.f32.mrf.mxu0
        %v1896 = vadd.f32 %v1882, %v1895
        %v1897 = vpop.f32.mrf.mxu0
        %v1898 = vadd.f32 %v1884, %v1897
        %1899 = vdwg.mxu0
        %v1900 = vadd.f32 %v896, %v1728
        %v1901 = vadd.f32 %v897, %v1784
        %v1902 = vadd.f32 %v898, %v1840
        %v1903 = vadd.f32 %v899, %v1896
        %v1904 = vadd.f32 %v900, %v1730
        %v1905 = vadd.f32 %v901, %v1786
        %v1906 = vadd.f32 %v902, %v1842
        %v1907 = vadd.f32 %v903, %v1898
        %1908 = vst [vmem:[%s432] sm:$0xff] %v1900
        %1909 = vst [vmem:[%s432 + $0x8] sm:$0xff] %v1901
        %1910 = vst [vmem:[%s432 + $0x10] sm:$0xff] %v1902
        %1911 = vst [vmem:[%s432 + $0x18] sm:$0xff] %v1903
        %1912 = vst [vmem:[%s432 + $0x20] sm:$0xff] %v1904
        %1913 = vst [vmem:[%s432 + $0x28] sm:$0xff] %v1905
        %1914 = vst [vmem:[%s432 + $0x30] sm:$0xff] %v1906
        %1915 = vst [vmem:[%s432 + $0x38] sm:$0xff] %v1907
        %s1916 = sand.u32 %s207, 1
        %s1917 = scalar_lea.sflag [#allocation4], %s1916
        %s1918 = sand.u32 %s207, 1
        %s1919 = smul.addr %s1918, 64
        %s1920 = scalar_lea.vmem [#allocation11], %s1919
        // Predicated region
        $region69: #{tpu_custom_call.1} parent=43 // pred_check
          %p1921 = pneg %p217
        $region70: #{tpu_custom_call.1} parent=43 // pred_check_branch
          %1923 = sbr.rel (%p1921) target = $region72
        $region71: #{tpu_custom_call.1} parent=43 // pred_region
          %s1924 = smul.u32 2, %s29
          %1926 = vsyncadd %s1917, 0
          %s1927 = smul.addr %s1924, 4
          %s1928 = smul.addr %s1927, 8
          %s1929 = scalar_lea.hbm %s6, %s1928
          %s1930 = sshll.u32 %s1920, 4
          %s1931 = int_to_ptr.vmem [resolvable:$true] %s1930
          %s1932 = sshll.u32 %s1929, 4
          %s1933 = int_to_ptr.hbm [resolvable:$true] %s1932
          %1938 = dma.vmem_to_hbm [thread:$0]  %s1931, 1024, %s1933, %s1917, 512, 512, 32
        $region72: #{tpu_custom_call.1} parent=43 // pred_fallthru
          _
      $region44: #{tpu_custom_call.1} parent=5 // pred_fallthru
        _
      %p1939 = scmp.le.s32.totalorder 2, %s20
      // Predicated region
      $region73: #{tpu_custom_call.1} parent=5 // pred_check
        %p1940 = pneg %p1939
      $region74: #{tpu_custom_call.1} parent=5 // pred_check_branch
        %1942 = sbr.rel (%p1940) target = $region76
      $region75: #{tpu_custom_call.1} parent=5 // pred_region
        %s1943 = ssub.s32 %s20, 2
        // Predicated region
        $region77: #{tpu_custom_call.1} parent=75 // pred_check
          %p1944 = pneg %p223
        $region78: #{tpu_custom_call.1} parent=75 // pred_check_branch
          %1946 = sbr.rel (%p1944) target = $region80
        $region79: #{tpu_custom_call.1} parent=75 // pred_region
          %s1947 = sand.u32 %s208, 1
          %s1948 = scalar_lea.sflag [#allocation4], %s1947
          %s1949 = sand.u32 %s208, 1
          %s1950 = smul.addr %s1949, 64
          %s1951 = scalar_lea.vmem [#allocation11], %s1950
          %1953 = dma.done %s1948, 1024
        $region80: #{tpu_custom_call.1} parent=75 // pred_fallthru
          _
      $region76: #{tpu_custom_call.1} parent=5 // pred_fallthru
        _
    $region6: #{tpu_custom_call.1} parent=1 // loop_footer
      %s24 = sadd.s32 1, %s20
    $region7: #{tpu_custom_call.1} parent=1 // loop_footer_branch
      %19 = sbr.rel target = $region3
    $region8: #{tpu_custom_call.1} parent=1 // loop_exit
      _
    %1954 = vsyncpa [#allocation3], 1
    %s1955 = scalar_lea.sflag [#allocation3], 1
    %1956 = vsyncpa %s1955, 1
    %1957 = vsyncpa [#allocation6], 1
    %s1958 = scalar_lea.sflag [#allocation6], 1
    %1959 = vsyncpa %s1958, 1
    %1960 = vsyncpa [#allocation9], 1
    %1961 = vsyncpa [#allocation4], 1
    %s1962 = scalar_lea.sflag [#allocation4], 1
    %1963 = vsyncpa %s1962, 1

</llo_original>
